<compile_context>
chip_gen: v6e
topology: v6e:2x2x1
jax: 0.10.0
libtpu: 0.0.40
codegen_flags: <defaults>
</compile_context>

<pallas_src>
import jax
import jax.numpy as jnp
from jax.experimental import pallas as pl
from jax.experimental.pallas import tpu as pltpu

INPUT_SIZE = 819
H1 = 64
H2 = 128
OUT = 1


def simplenet_kernel(x_ref, w1_ref, b1_ref, w2_ref, b2_ref, w3_ref, b3_ref, o_ref):
    # x_ref : (TB, 819) bf16        w1: (819, 64) bf16    b1: (1, 64)  f32
    # w2    : (64, 128) bf16        b2: (1, 128)  f32
    # w3    : (1, 128)  bf16  (PyTorch (out, in) layout)  b3: (1, 1)   f32
    # o_ref : (1, TB)   f32  -- lane-dense: batch lives in the lane dim
    x = x_ref[...].astype(w1_ref.dtype)          # no-op: wrapper guarantees bf16

    h1 = jnp.dot(x, w1_ref[...], preferred_element_type=jnp.float32) + b1_ref[...]
    h1 = jnp.maximum(h1, 0.0).astype(w2_ref.dtype)             # ReLU, back to bf16

    h2 = jnp.dot(h1, w2_ref[...], preferred_element_type=jnp.float32) + b2_ref[...]
    h2 = jnp.maximum(h2, 0.0).astype(w3_ref.dtype)             # ReLU, back to bf16

    # Final Linear(128 -> 1) fused into the lane-dense output write:
    #   logit[1, TB] = w3[1, 128] · h2[TB, 128]^T  (contract last dims; q @ kᵀ pattern,
    #   single-pass bf16 MXU op, f32 accumulate, no relayout of the activations).
    logit = jax.lax.dot_general(
        w3_ref[...], h2, (((1,), (1,)), ((), ())),
        preferred_element_type=jnp.float32) + b3_ref[...]
    o_ref[...] = jax.nn.sigmoid(logit).astype(o_ref.dtype)     # Sigmoid


def _tpu_generation():
    """Best-effort TPU generation number (5/6/7), or None if undetectable."""
    try:
        kind = jax.devices()[0].device_kind.lower()
    except Exception:
        return None
    for g in (7, 6, 5, 4):
        if f"v{g}" in kind:
            return g
    return None


def _tile_config(B, block_b):
    """Per-generation (tb, vmem_limit_bytes) following the v5e/v6e/v7x budgets above."""
    gen = _tpu_generation()
    if gen is not None and gen >= 7:
        default_tb, vmem_limit, min_steps = 8192, 48 * 1024 * 1024, 6
    elif gen == 6:
        default_tb, vmem_limit, min_steps = 8192, 64 * 1024 * 1024, 1
    else:  # v5e or unknown: respect the 16 MiB scoped-VMEM default
        default_tb, vmem_limit, min_steps = 2048, None, 1

    tb = block_b if block_b is not None else default_tb
    if B <= tb:
        tb = B                       # single tile: block == full array dims (always legal)
    else:
        # keep both v7x TensorCores busy: >= min_steps grid steps when B allows it
        if min_steps > 1:
            tb = min(tb, max(128, (B // min_steps) // 128 * 128))
        assert tb % 128 == 0, "batch tile must be a multiple of 128 (lane-dense out)"
    return tb, vmem_limit


def simplenet_forward(x, params, *, block_b=None):
    """x: (B, 819), ideally already bf16. params: see init_params. Returns (B, 1) f32."""
    B, F = x.shape
    assert F == INPUT_SIZE

    # Guarantee bf16 x in HBM.  Prefer the producer to hand bf16 (then this is a
    # no-op); converting f32 here still halves the kernel's HBM read but costs an
    # extra XLA pass over x.
    if x.dtype != jnp.bfloat16:
        x = x.astype(jnp.bfloat16)

    tb, vmem_limit = _tile_config(B, block_b)
    grid = (pl.cdiv(B, tb),)

    def resident(shape):  # weights/biases: same block every step -> fetched once
        return pl.BlockSpec(shape, lambda i: (0, 0))

    out_t = pl.pallas_call(
        simplenet_kernel,
        out_shape=jax.ShapeDtypeStruct((1, B), jnp.float32),
        grid=grid,
        in_specs=[
            pl.BlockSpec((tb, F), lambda i: (i, 0)),    # x: pipelined over batch tiles
            resident((F, H1)),  resident((1, H1)),
            resident((H1, H2)), resident((1, H2)),
            resident((1, H2)),  resident((1, OUT)),
        ],
        out_specs=pl.BlockSpec((1, tb), lambda i: (0, i)),      # lane-dense output
        compiler_params=pltpu.CompilerParams(
            dimension_semantics=("parallel",),
            vmem_limit_bytes=vmem_limit),
    )(x, params["w1"], params["b1"], params["w2"], params["b2"],
      params["w3"], params["b3"])

    return out_t.reshape(B, 1)        # back to the PyTorch (B, 1) convention


def init_params(key, dtype=jnp.bfloat16):
    """Mirrors nn.Linear's U(-1/sqrt(fan_in), 1/sqrt(fan_in)) init.

    w1, w2 are stored (in, out) in bf16; w3 is stored in PyTorch (out, in) layout
    (1, 128) and also bf16, so the last layer is a single-pass bf16 MXU op fused into
    the lane-dense output write.  Biases stay f32 (bias-add / sigmoid run in f32).
    One-time conversion at init — no per-call casts that rewrite HBM.
    """
    ks = jax.random.split(key, 6)

    def linear(kw, kb, fan_in, fan_out):
        bound = 1.0 / (fan_in ** 0.5)
        w = jax.random.uniform(kw, (fan_in, fan_out), jnp.float32, -bound, bound)
        b = jax.random.uniform(kb, (1, fan_out), jnp.float32, -bound, bound)
        return w, b

    w1, b1 = linear(ks[0], ks[1], INPUT_SIZE, H1)
    w2, b2 = linear(ks[2], ks[3], H1, H2)
    w3, b3 = linear(ks[4], ks[5], H2, OUT)
    return {
        "w1": w1.astype(dtype), "b1": b1,
        "w2": w2.astype(dtype), "b2": b2,
        "w3": w3.T.astype(dtype), "b3": b3,    # (1, H2) bf16, (1, 1) f32
    }


def reference_forward(x, params):
    """Pure-JAX reference using the same operands / rounding points as the kernel."""
    f32 = jnp.float32
    w1, w2, w3 = params["w1"], params["w2"], params["w3"]
    h1 = jnp.maximum(
        jnp.dot(x.astype(w1.dtype), w1, preferred_element_type=f32) + params["b1"], 0.0)
    h2 = jnp.maximum(
        jnp.dot(h1.astype(w2.dtype), w2, preferred_element_type=f32) + params["b2"], 0.0)
    logit = jnp.dot(h2.astype(w3.dtype), w3.T, preferred_element_type=f32) + params["b3"]
    return jax.nn.sigmoid(logit)


if __name__ == "__main__":
    key = jax.random.PRNGKey(0)
    kx, kp = jax.random.split(key)
    params = init_params(kp)

    # Tiled case: B=256 with 128-row batch tiles -> 2 pipelined "parallel" grid steps.
    B = 256
    x = jax.random.normal(kx, (B, INPUT_SIZE), jnp.float32).astype(jnp.bfloat16)

    out = jax.block_until_ready(simplenet_forward(x, params, block_b=128))
    ref = reference_forward(x, params)
    assert out.shape == (B, OUT)
    assert jnp.allclose(out, ref, atol=2e-3, rtol=2e-3), float(jnp.max(jnp.abs(out - ref)))

    # Tiny-batch case (single grid step, block == full array dims).  At this size the
    # call is launch/DMA-latency bound; kept only as a correctness check.
    x_small = x[:8]
    out_small = jax.block_until_ready(simplenet_forward(x_small, params))
    assert out_small.shape == (8, OUT)
    assert jnp.allclose(out_small, ref[:8], atol=2e-3, rtol=2e-3)

    # Auto-tiled path with the per-generation defaults (single tile at this small B).
    out_auto = jax.block_until_ready(simplenet_forward(x, params))
    assert jnp.allclose(out_auto, ref, atol=2e-3, rtol=2e-3)

    print("KERNEL_OK")
</pallas_src>

<mosaic_0001>
module attributes {stable_mosaic.version = 11 : i64} {
  func.func @simplenet_kernel(%arg0: i32, %arg1: memref<128x819xbf16, #tpu.memory_space<vmem>>, %arg2: memref<819x64xbf16, #tpu.memory_space<vmem>>, %arg3: memref<1x64xf32, #tpu.memory_space<vmem>>, %arg4: memref<64x128xbf16, #tpu.memory_space<vmem>>, %arg5: memref<1x128xf32, #tpu.memory_space<vmem>>, %arg6: memref<1x128xbf16, #tpu.memory_space<vmem>>, %arg7: memref<1x1xf32, #tpu.memory_space<vmem>>, %arg8: memref<1x128xf32, #tpu.memory_space<vmem>>) attributes {dimension_semantics = [#tpu.dimension_semantics<parallel>], iteration_bounds = array<i64: 2>, scalar_prefetch = 0 : i64, scratch_operands = 0 : i64, tpu.core_type = #tpu.core_type<tc>, window_params = [{transform_indices = @transform_0, window_bounds = array<i64: 128, 819>}, {pipeline_mode = #tpu.pipeline_mode<synchronous>, transform_indices = @transform_1, window_bounds = array<i64: 819, 64>}, {pipeline_mode = #tpu.pipeline_mode<synchronous>, transform_indices = @transform_2, window_bounds = array<i64: 1, 64>}, {pipeline_mode = #tpu.pipeline_mode<synchronous>, transform_indices = @transform_3, window_bounds = array<i64: 64, 128>}, {pipeline_mode = #tpu.pipeline_mode<synchronous>, transform_indices = @transform_4, window_bounds = array<i64: 1, 128>}, {pipeline_mode = #tpu.pipeline_mode<synchronous>, transform_indices = @transform_5, window_bounds = array<i64: 1, 128>}, {pipeline_mode = #tpu.pipeline_mode<synchronous>, transform_indices = @transform_6, window_bounds = array<i64: 1, 1>}, {transform_indices = @transform_7, window_bounds = array<i64: 1, 128>}]} {
    %c0 = arith.constant 0 : index
    %c0_0 = arith.constant 0 : index
    %0 = vector.load %arg1[%c0, %c0_0] : memref<128x819xbf16, #tpu.memory_space<vmem>>, vector<128x819xbf16>
    %c0_1 = arith.constant 0 : index
    %c0_2 = arith.constant 0 : index
    %1 = vector.load %arg2[%c0_1, %c0_2] : memref<819x64xbf16, #tpu.memory_space<vmem>>, vector<819x64xbf16>
    %cst = arith.constant dense<0.000000e+00> : vector<128x64xf32>
    %2 = tpu.matmul %0, %1, %cst {dimension_numbers = #tpu.dot_dimension_numbers<[1], [0], [0], [1], [0, 0, 1, 1], [], []>} : vector<128x819xbf16>, vector<819x64xbf16>, vector<128x64xf32> -> vector<128x64xf32>
    %c0_3 = arith.constant 0 : index
    %c0_4 = arith.constant 0 : index
    %3 = vector.load %arg3[%c0_3, %c0_4] : memref<1x64xf32, #tpu.memory_space<vmem>>, vector<1x64xf32>
    %4 = vector.broadcast %3 : vector<1x64xf32> to vector<128x64xf32>
    %5 = arith.addf %2, %4 : vector<128x64xf32>
    %cst_5 = arith.constant 0.000000e+00 : f32
    %6 = vector.broadcast %cst_5 : f32 to vector<128x64xf32>
    %7 = arith.maximumf %5, %6 : vector<128x64xf32>
    %8 = arith.truncf %7 : vector<128x64xf32> to vector<128x64xbf16>
    %c0_6 = arith.constant 0 : index
    %c0_7 = arith.constant 0 : index
    %9 = vector.load %arg4[%c0_6, %c0_7] : memref<64x128xbf16, #tpu.memory_space<vmem>>, vector<64x128xbf16>
    %cst_8 = arith.constant dense<0.000000e+00> : vector<128x128xf32>
    %10 = tpu.matmul %8, %9, %cst_8 {dimension_numbers = #tpu.dot_dimension_numbers<[1], [0], [0], [1], [0, 0, 1, 1], [], []>} : vector<128x64xbf16>, vector<64x128xbf16>, vector<128x128xf32> -> vector<128x128xf32>
    %c0_9 = arith.constant 0 : index
    %c0_10 = arith.constant 0 : index
    %11 = vector.load %arg5[%c0_9, %c0_10] : memref<1x128xf32, #tpu.memory_space<vmem>>, vector<1x128xf32>
    %12 = vector.broadcast %11 : vector<1x128xf32> to vector<128x128xf32>
    %13 = arith.addf %10, %12 : vector<128x128xf32>
    %cst_11 = arith.constant 0.000000e+00 : f32
    %14 = vector.broadcast %cst_11 : f32 to vector<128x128xf32>
    %15 = arith.maximumf %13, %14 : vector<128x128xf32>
    %16 = arith.truncf %15 : vector<128x128xf32> to vector<128x128xbf16>
    %c0_12 = arith.constant 0 : index
    %c0_13 = arith.constant 0 : index
    %17 = vector.load %arg6[%c0_12, %c0_13] : memref<1x128xbf16, #tpu.memory_space<vmem>>, vector<1x128xbf16>
    %cst_14 = arith.constant dense<0.000000e+00> : vector<1x128xf32>
    %18 = tpu.matmul %17, %16, %cst_14 {dimension_numbers = #tpu.dot_dimension_numbers<[1], [1], [0], [0], [0, 0, 1, 0], [], []>} : vector<1x128xbf16>, vector<128x128xbf16>, vector<1x128xf32> -> vector<1x128xf32>
    %c0_15 = arith.constant 0 : index
    %c0_16 = arith.constant 0 : index
    %19 = vector.load %arg7[%c0_15, %c0_16] : memref<1x1xf32, #tpu.memory_space<vmem>>, vector<1x1xf32>
    %20 = vector.broadcast %19 : vector<1x1xf32> to vector<1x128xf32>
    %21 = arith.addf %18, %20 : vector<1x128xf32>
    %22 = arith.negf %21 : vector<1x128xf32>
    %23 = math.exp %22 : vector<1x128xf32>
    %cst_17 = arith.constant 1.000000e+00 : f32
    %24 = vector.broadcast %cst_17 : f32 to vector<1x128xf32>
    %25 = arith.addf %24, %23 : vector<1x128xf32>
    %26 = arith.divf %24, %25 : vector<1x128xf32>
    %c0_18 = arith.constant 0 : index
    %c0_19 = arith.constant 0 : index
    %27 = vector.load %arg8[%c0_18, %c0_19] : memref<1x128xf32, #tpu.memory_space<vmem>>, vector<1x128xf32>
    tpu.vector_store %arg8[%c0_18, %c0_19], %26 {strides = array<i32>} : memref<1x128xf32, #tpu.memory_space<vmem>>, vector<1x128xf32>,
    return
  }
  func.func @transform_0(%arg0: i32) -> (i32, i32) {
    %c0_i32 = arith.constant 0 : i32
    %c0_i32_0 = arith.constant 0 : i32
    return %arg0, %c0_i32 : i32, i32
  }
  func.func @transform_1(%arg0: i32) -> (i32, i32) {
    %c0_i32 = arith.constant 0 : i32
    %c0_i32_0 = arith.constant 0 : i32
    %c0_i32_1 = arith.constant 0 : i32
    return %c0_i32, %c0_i32_0 : i32, i32
  }
  func.func @transform_2(%arg0: i32) -> (i32, i32) {
    %c0_i32 = arith.constant 0 : i32
    %c0_i32_0 = arith.constant 0 : i32
    %c0_i32_1 = arith.constant 0 : i32
    return %c0_i32, %c0_i32_0 : i32, i32
  }
  func.func @transform_3(%arg0: i32) -> (i32, i32) {
    %c0_i32 = arith.constant 0 : i32
    %c0_i32_0 = arith.constant 0 : i32
    %c0_i32_1 = arith.constant 0 : i32
    return %c0_i32, %c0_i32_0 : i32, i32
  }
  func.func @transform_4(%arg0: i32) -> (i32, i32) {
    %c0_i32 = arith.constant 0 : i32
    %c0_i32_0 = arith.constant 0 : i32
    %c0_i32_1 = arith.constant 0 : i32
    return %c0_i32, %c0_i32_0 : i32, i32
  }
  func.func @transform_5(%arg0: i32) -> (i32, i32) {
    %c0_i32 = arith.constant 0 : i32
    %c0_i32_0 = arith.constant 0 : i32
    %c0_i32_1 = arith.constant 0 : i32
    return %c0_i32, %c0_i32_0 : i32, i32
  }
  func.func @transform_6(%arg0: i32) -> (i32, i32) {
    %c0_i32 = arith.constant 0 : i32
    %c0_i32_0 = arith.constant 0 : i32
    %c0_i32_1 = arith.constant 0 : i32
    return %c0_i32, %c0_i32_0 : i32, i32
  }
  func.func @transform_7(%arg0: i32) -> (i32, i32) {
    %c0_i32 = arith.constant 0 : i32
    %c0_i32_0 = arith.constant 0 : i32
    return %c0_i32, %arg0 : i32, i32
  }
}

</mosaic_0001>

<llo_original>
// kernel: tpu_custom_call.1
$region0: #{tpu_custom_call.1}
  #allocation0 [shape = 'u32[]', space=smem, size = 0x4, offset = 0x4, fixed_abs, tag = 'smem constant byte address 0x4 - core index']
  #allocation1 [shape = 'u32[144,128]{1,0:T(1,128)}', space=vmem, size = 0x12000, scoped, tag = 'internal scratch']
  #allocation2 [shape = 'f32[1,1]{1,0:T(1,128)S(1)}', space=vmem, size = 0x200, scoped, tag = 'scoped memory for tpu_custom_call.1']
  %s0 = inlined_call_operand.vmem [shape: bf16[256,819], index: 0, kind: input, shape index: {}]
  %s1 = inlined_call_operand.vmem [shape: bf16[819,64], index: 1, kind: input, shape index: {}]
  %s2 = inlined_call_operand.vmem [shape: f32[1,64], index: 2, kind: input, shape index: {}]
  %s3 = inlined_call_operand.vmem [shape: bf16[64,128], index: 3, kind: input, shape index: {}]
  %s4 = inlined_call_operand.vmem [shape: f32[1,128], index: 4, kind: input, shape index: {}]
  %s5 = inlined_call_operand.vmem [shape: bf16[1,128], index: 5, kind: input, shape index: {}]
  %s6 = inlined_call_operand.<no memory space> [shape: f32[1,1], index: 6, kind: input, shape index: {}]
  %s7 = inlined_call_operand.hbm [shape: f32[1,256], index: 7, kind: output, shape index: {}]
  %s8 = sld [smem:[#allocation0]]
  $region61: #{tpu_custom_call.1} parent=0
    _
  %s10 = ssub.s32 1, %s8
  %s11 = scalar_select 0, %s10, %s8
  %v12 = vstv %s6
  %13 = vst [vmem:[#allocation2] sm:$0x1] %v12
  $region1: #{tpu_custom_call.1} parent=0
    #allocation3 [shape = 'u8[1024]{0}', space=vmem, size = 0x400, scoped, tag = 'output window, operand 0']
    #allocation4 [shape = 's32[2]{0}', space=sflag, size = 0x8, scoped, tag = 'scoped memory for tpu_custom_call.1']
    %14 = vsyncpa [#allocation4], 0
    %s15 = scalar_lea.sflag [#allocation4], 1
    %16 = vsyncpa %s15, 0
    loop: start=0, step=1, limit=4
    $region2: #{tpu_custom_call.1} parent=1 // loop_pre_header
      _
    $region3: #{tpu_custom_call.1} parent=1 // loop_header
      %s18 = sphi 0, %s22
      %p19 = scmp.ge.s32.totalorder %s18, 4
      %s28 = sphi 0, %s30
      %s31 = sphi 0, %s28
      %s32 = sphi 0, %s31
      %s48 = sphi 0, %s32
      %s52 = sphi 0, %s52
      %s54 = sphi 0, %s52
      %s55 = sphi 0, %s54
      %s69 = sphi 0, %s55
      %s73 = sphi 0, %s73
      %s75 = sphi 0, %s73
      %s76 = sphi 0, %s75
      %s90 = sphi 0, %s76
      %s94 = sphi 0, %s94
      %s96 = sphi 0, %s94
      %s97 = sphi 0, %s96
      %s111 = sphi 0, %s97
      %s115 = sphi 0, %s115
      %s117 = sphi 0, %s115
      %s118 = sphi 0, %s117
      %s132 = sphi 0, %s118
      %s136 = sphi 0, %s136
      %s138 = sphi 0, %s136
      %s139 = sphi 0, %s138
      %s153 = sphi 0, %s139
      %s157 = sphi 0, %s157
      %s159 = sphi 0, %s157
      %s160 = sphi 0, %s159
      %s174 = sphi 0, %s160
      %s180 = sphi 0, %s182
      %s183 = sphi 0, %s180
      %s184 = sphi 0, %s183
      %s200 = sphi 0, %s184
    $region4: #{tpu_custom_call.1} parent=1 // loop_header_branch
      %21 = sbr.rel (%p19) target = $region8
    $region5: #{tpu_custom_call.1} parent=1 // loop_body
      %s23 = ssub.s32 %s18, 1
      %s24 = ssub.s32 %s18, 2
      %s25 = sadd.s32 %s18, 1
      %s26 = ssub.s32 %s18, %s25
      %p27 = scmp.eq.s32.totalorder %s26, 0
      %s29 = sadd.s32 %s28, 1
      %s30 = scalar_select %p27, %s28, %s29
      %p33 = pneg %p27
      %p34 = scmp.eq.s32.totalorder %s18, 1
      %p35 = por %p33, %p34
      %p36 = scmp.ne.s32.totalorder %s28, %s31
      %p37 = scmp.eq.s32.totalorder %s18, 0
      %p38 = por %p36, %p37
      %p39 = scmp.ne.s32.totalorder %s28, %s31
      %p40 = scmp.eq.s32.totalorder %s23, 1
      %p41 = por %p39, %p40
      %p42 = scmp.ne.s32.totalorder %s31, %s32
      %p43 = scmp.eq.s32.totalorder %s23, 0
      %p44 = por %p42, %p43
      %p45 = scmp.ne.s32.totalorder %s31, %s32
      %p46 = scmp.eq.s32.totalorder %s24, 1
      %p47 = por %p45, %p46
      %p49 = scmp.ne.s32.totalorder %s32, %s48
      %p50 = scmp.eq.s32.totalorder %s24, 0
      %p51 = por %p49, %p50
      %s53 = sadd.s32 %s52, 1
      %p56 = scmp.eq.s32.totalorder %s18, 1
      %p57 = scmp.ne.s32.totalorder %s52, %s54
      %p58 = scmp.eq.s32.totalorder %s18, 0
      %p59 = por %p57, %p58
      %p60 = scmp.ne.s32.totalorder %s52, %s54
      %p61 = scmp.eq.s32.totalorder %s23, 1
      %p62 = por %p60, %p61
      %p63 = scmp.ne.s32.totalorder %s54, %s55
      %p64 = scmp.eq.s32.totalorder %s23, 0
      %p65 = por %p63, %p64
      %p66 = scmp.ne.s32.totalorder %s54, %s55
      %p67 = scmp.eq.s32.totalorder %s24, 1
      %p68 = por %p66, %p67
      %p70 = scmp.ne.s32.totalorder %s55, %s69
      %p71 = scmp.eq.s32.totalorder %s24, 0
      %p72 = por %p70, %p71
      %s74 = sadd.s32 %s73, 1
      %p77 = scmp.eq.s32.totalorder %s18, 1
      %p78 = scmp.ne.s32.totalorder %s73, %s75
      %p79 = scmp.eq.s32.totalorder %s18, 0
      %p80 = por %p78, %p79
      %p81 = scmp.ne.s32.totalorder %s73, %s75
      %p82 = scmp.eq.s32.totalorder %s23, 1
      %p83 = por %p81, %p82
      %p84 = scmp.ne.s32.totalorder %s75, %s76
      %p85 = scmp.eq.s32.totalorder %s23, 0
      %p86 = por %p84, %p85
      %p87 = scmp.ne.s32.totalorder %s75, %s76
      %p88 = scmp.eq.s32.totalorder %s24, 1
      %p89 = por %p87, %p88
      %p91 = scmp.ne.s32.totalorder %s76, %s90
      %p92 = scmp.eq.s32.totalorder %s24, 0
      %p93 = por %p91, %p92
      %s95 = sadd.s32 %s94, 1
      %p98 = scmp.eq.s32.totalorder %s18, 1
      %p99 = scmp.ne.s32.totalorder %s94, %s96
      %p100 = scmp.eq.s32.totalorder %s18, 0
      %p101 = por %p99, %p100
      %p102 = scmp.ne.s32.totalorder %s94, %s96
      %p103 = scmp.eq.s32.totalorder %s23, 1
      %p104 = por %p102, %p103
      %p105 = scmp.ne.s32.totalorder %s96, %s97
      %p106 = scmp.eq.s32.totalorder %s23, 0
      %p107 = por %p105, %p106
      %p108 = scmp.ne.s32.totalorder %s96, %s97
      %p109 = scmp.eq.s32.totalorder %s24, 1
      %p110 = por %p108, %p109
      %p112 = scmp.ne.s32.totalorder %s97, %s111
      %p113 = scmp.eq.s32.totalorder %s24, 0
      %p114 = por %p112, %p113
      %s116 = sadd.s32 %s115, 1
      %p119 = scmp.eq.s32.totalorder %s18, 1
      %p120 = scmp.ne.s32.totalorder %s115, %s117
      %p121 = scmp.eq.s32.totalorder %s18, 0
      %p122 = por %p120, %p121
      %p123 = scmp.ne.s32.totalorder %s115, %s117
      %p124 = scmp.eq.s32.totalorder %s23, 1
      %p125 = por %p123, %p124
      %p126 = scmp.ne.s32.totalorder %s117, %s118
      %p127 = scmp.eq.s32.totalorder %s23, 0
      %p128 = por %p126, %p127
      %p129 = scmp.ne.s32.totalorder %s117, %s118
      %p130 = scmp.eq.s32.totalorder %s24, 1
      %p131 = por %p129, %p130
      %p133 = scmp.ne.s32.totalorder %s118, %s132
      %p134 = scmp.eq.s32.totalorder %s24, 0
      %p135 = por %p133, %p134
      %s137 = sadd.s32 %s136, 1
      %p140 = scmp.eq.s32.totalorder %s18, 1
      %p141 = scmp.ne.s32.totalorder %s136, %s138
      %p142 = scmp.eq.s32.totalorder %s18, 0
      %p143 = por %p141, %p142
      %p144 = scmp.ne.s32.totalorder %s136, %s138
      %p145 = scmp.eq.s32.totalorder %s23, 1
      %p146 = por %p144, %p145
      %p147 = scmp.ne.s32.totalorder %s138, %s139
      %p148 = scmp.eq.s32.totalorder %s23, 0
      %p149 = por %p147, %p148
      %p150 = scmp.ne.s32.totalorder %s138, %s139
      %p151 = scmp.eq.s32.totalorder %s24, 1
      %p152 = por %p150, %p151
      %p154 = scmp.ne.s32.totalorder %s139, %s153
      %p155 = scmp.eq.s32.totalorder %s24, 0
      %p156 = por %p154, %p155
      %s158 = sadd.s32 %s157, 1
      %p161 = scmp.eq.s32.totalorder %s18, 1
      %p162 = scmp.ne.s32.totalorder %s157, %s159
      %p163 = scmp.eq.s32.totalorder %s18, 0
      %p164 = por %p162, %p163
      %p165 = scmp.ne.s32.totalorder %s157, %s159
      %p166 = scmp.eq.s32.totalorder %s23, 1
      %p167 = por %p165, %p166
      %p168 = scmp.ne.s32.totalorder %s159, %s160
      %p169 = scmp.eq.s32.totalorder %s23, 0
      %p170 = por %p168, %p169
      %p171 = scmp.ne.s32.totalorder %s159, %s160
      %p172 = scmp.eq.s32.totalorder %s24, 1
      %p173 = por %p171, %p172
      %p175 = scmp.ne.s32.totalorder %s160, %s174
      %p176 = scmp.eq.s32.totalorder %s24, 0
      %p177 = por %p175, %p176
      %s178 = ssub.s32 %s18, %s25
      %p179 = scmp.eq.s32.totalorder %s178, 0
      %s181 = sadd.s32 %s180, 1
      %s182 = scalar_select %p179, %s180, %s181
      %p185 = pneg %p179
      %p186 = scmp.eq.s32.totalorder %s18, 1
      %p187 = por %p185, %p186
      %p188 = scmp.ne.s32.totalorder %s180, %s183
      %p189 = scmp.eq.s32.totalorder %s18, 0
      %p190 = por %p188, %p189
      %p191 = scmp.ne.s32.totalorder %s180, %s183
      %p192 = scmp.eq.s32.totalorder %s23, 1
      %p193 = por %p191, %p192
      %p194 = scmp.ne.s32.totalorder %s183, %s184
      %p195 = scmp.eq.s32.totalorder %s23, 0
      %p196 = por %p194, %p195
      %p197 = scmp.ne.s32.totalorder %s183, %s184
      %p198 = scmp.eq.s32.totalorder %s24, 1
      %p199 = por %p197, %p198
      %p201 = scmp.ne.s32.totalorder %s184, %s200
      %p202 = scmp.eq.s32.totalorder %s24, 0
      %p203 = por %p201, %p202
      %p204 = scmp.le.s32.totalorder 1, %s18
      %p205 = scmp.lt.s32.totalorder %s18, 3
      %p206 = pnand %p204, %p205
      %p207 = pneg %p206
      // Predicated region
      $region9: #{tpu_custom_call.1} parent=5 // pred_check
        _
      $region10: #{tpu_custom_call.1} parent=5 // pred_check_branch
        %209 = sbr.rel (%p206) target = $region12
      $region11: #{tpu_custom_call.1} parent=5 // pred_region
        %s210 = ssub.s32 %s18, 1
        // Predicated region
        $region13: #{tpu_custom_call.1} parent=11 // pred_check
          %p211 = pneg %p65
        $region14: #{tpu_custom_call.1} parent=11 // pred_check_branch
          %213 = sbr.rel (%p211) target = $region16
        $region15: #{tpu_custom_call.1} parent=11 // pred_region
          _
        $region16: #{tpu_custom_call.1} parent=11 // pred_fallthru
          _
        // Predicated region
        $region17: #{tpu_custom_call.1} parent=11 // pred_check
          %p214 = pneg %p86
        $region18: #{tpu_custom_call.1} parent=11 // pred_check_branch
          %216 = sbr.rel (%p214) target = $region20
        $region19: #{tpu_custom_call.1} parent=11 // pred_region
          _
        $region20: #{tpu_custom_call.1} parent=11 // pred_fallthru
          _
        // Predicated region
        $region21: #{tpu_custom_call.1} parent=11 // pred_check
          %p217 = pneg %p107
        $region22: #{tpu_custom_call.1} parent=11 // pred_check_branch
          %219 = sbr.rel (%p217) target = $region24
        $region23: #{tpu_custom_call.1} parent=11 // pred_region
          _
        $region24: #{tpu_custom_call.1} parent=11 // pred_fallthru
          _
        // Predicated region
        $region25: #{tpu_custom_call.1} parent=11 // pred_check
          %p220 = pneg %p128
        $region26: #{tpu_custom_call.1} parent=11 // pred_check_branch
          %222 = sbr.rel (%p220) target = $region28
        $region27: #{tpu_custom_call.1} parent=11 // pred_region
          _
        $region28: #{tpu_custom_call.1} parent=11 // pred_fallthru
          _
        // Predicated region
        $region29: #{tpu_custom_call.1} parent=11 // pred_check
          %p223 = pneg %p149
        $region30: #{tpu_custom_call.1} parent=11 // pred_check_branch
          %225 = sbr.rel (%p223) target = $region32
        $region31: #{tpu_custom_call.1} parent=11 // pred_region
          _
        $region32: #{tpu_custom_call.1} parent=11 // pred_fallthru
          _
        // Predicated region
        $region33: #{tpu_custom_call.1} parent=11 // pred_check
          %p226 = pneg %p170
        $region34: #{tpu_custom_call.1} parent=11 // pred_check_branch
          %228 = sbr.rel (%p226) target = $region36
        $region35: #{tpu_custom_call.1} parent=11 // pred_region
          _
        $region36: #{tpu_custom_call.1} parent=11 // pred_fallthru
          _
      $region12: #{tpu_custom_call.1} parent=5 // pred_fallthru
        _
      %p229 = scmp.lt.s32.totalorder %s18, 2
      // Predicated region
      $region37: #{tpu_custom_call.1} parent=5 // pred_check
        %p230 = pneg %p229
      $region38: #{tpu_custom_call.1} parent=5 // pred_check_branch
        %232 = sbr.rel (%p230) target = $region40
      $region39: #{tpu_custom_call.1} parent=5 // pred_region
        // Predicated region
        $region41: #{tpu_custom_call.1} parent=39 // pred_check
          %p233 = pneg %p38
        $region42: #{tpu_custom_call.1} parent=39 // pred_check_branch
          %235 = sbr.rel (%p233) target = $region44
        $region43: #{tpu_custom_call.1} parent=39 // pred_region
          %s236 = smul.u32 16, %s18
          %p237 = scmp.lt.s32.totalorder %s236, 31
          %s238 = scalar_select %p237, %s236, 31
          %s239 = smul.addr %s238, 7
          %s240 = smul.addr %s239, 4
          %s241 = scalar_lea.vmem %s0, %s240
          %s242 = smul.u32 16, %s18
        $region44: #{tpu_custom_call.1} parent=39 // pred_fallthru
          _
      $region40: #{tpu_custom_call.1} parent=5 // pred_fallthru
        _
      %p243 = scmp.le.s32.totalorder 1, %s18
      %p244 = scmp.lt.s32.totalorder %s18, 3
      %p245 = pnand %p243, %p244
      %p246 = pneg %p245
      // Predicated region
      $region45: #{tpu_custom_call.1} parent=5 // pred_check
        _
      $region46: #{tpu_custom_call.1} parent=5 // pred_check_branch
        %248 = sbr.rel (%p245) target = $region48
      $region47: #{tpu_custom_call.1} parent=5 // pred_region
        %s249 = ssub.s32 %s18, 1
        %s250 = smul.u32 16, %s23
        %p251 = scmp.lt.s32.totalorder %s250, 31
        %s252 = scalar_select %p251, %s250, 31
        %s253 = smul.addr %s252, 7
        %s254 = smul.addr %s253, 4
        %s255 = scalar_lea.vmem %s0, %s254
        %p256 = pneg %p44
        %p257 = pneg %p41
        %p258 = pneg %p65
        %p259 = pneg %p62
        %p260 = pneg %p86
        %p261 = pneg %p83
        %p262 = pneg %p107
        %p263 = pneg %p104
        %p264 = pneg %p128
        %p265 = pneg %p125
        %p266 = pneg %p149
        %p267 = pneg %p146
        %p268 = pneg %p170
        %p269 = pneg %p167
        %p270 = pneg %p196
        %p271 = pneg %p193
        %s272 = sand.u32 %s183, 1
        %s273 = scalar_lea.sflag [#allocation4], %s272
        %s274 = sand.u32 %s183, 1
        %s275 = scalar_lea.vmem [#allocation3], %s274
        %s276 = smul.u32 16, %s23
        %p277 = scmp.lt.s32.totalorder %s276, 31
        %s278 = scalar_select %p277, %s276, 31
        %s279 = smul.addr %s278, 7
        %s280 = smul.addr %s279, 4
        %s281 = scalar_lea.vmem %s0, %s280
        %s282 = smul.u32 16, %s23
        %v284 = vld [vmem:[%s281] sm:$0xff]
        %v285 = vld [vmem:[%s281 + $0x8] sm:$0xff]
        %v286 = vld [vmem:[%s281 + $0x10] sm:$0xff]
        %v287 = vld [vmem:[%s281 + $0x18] sm:$0xf]
        %v288 = vld [vmem:[%s281 + $0x1c] sm:$0xff]
        %v289 = vld [vmem:[%s281 + $0x24] sm:$0xff]
        %v290 = vld [vmem:[%s281 + $0x2c] sm:$0xff]
        %v291 = vld [vmem:[%s281 + $0x34] sm:$0xf]
        %v292 = vld [vmem:[%s281 + $0x38] sm:$0xff]
        %v293 = vld [vmem:[%s281 + $0x40] sm:$0xff]
        %v294 = vld [vmem:[%s281 + $0x48] sm:$0xff]
        %v295 = vld [vmem:[%s281 + $0x50] sm:$0xf]
        %v296 = vld [vmem:[%s281 + $0x54] sm:$0xff]
        %v297 = vld [vmem:[%s281 + $0x5c] sm:$0xff]
        %v298 = vld [vmem:[%s281 + $0x64] sm:$0xff]
        %v299 = vld [vmem:[%s281 + $0x6c] sm:$0xf]
        %v300 = vld [vmem:[%s281 + $0x70] sm:$0xff]
        %v301 = vld [vmem:[%s281 + $0x78] sm:$0xff]
        %v302 = vld [vmem:[%s281 + $0x80] sm:$0xff]
        %v303 = vld [vmem:[%s281 + $0x88] sm:$0xf]
        %v304 = vld [vmem:[%s281 + $0x8c] sm:$0xff]
        %v305 = vld [vmem:[%s281 + $0x94] sm:$0xff]
        %v306 = vld [vmem:[%s281 + $0x9c] sm:$0xff]
        %v307 = vld [vmem:[%s281 + $0xa4] sm:$0xf]
        %v308 = vld [vmem:[%s281 + $0xa8] sm:$0xff]
        %v309 = vld [vmem:[%s281 + $0xb0] sm:$0xff]
        %v310 = vld [vmem:[%s281 + $0xb8] sm:$0xff]
        %v311 = vld [vmem:[%s281 + $0xc0] sm:$0xf]
        %v312 = vld [vmem:[%s281 + $0xc4] sm:$0xff]
        %v313 = vld [vmem:[%s281 + $0xcc] sm:$0xff]
        %v314 = vld [vmem:[%s281 + $0xd4] sm:$0xff]
        %v315 = vld [vmem:[%s281 + $0xdc] sm:$0xf]
        %v316 = vld [vmem:[%s281 + $0xe0] sm:$0xff]
        %v317 = vld [vmem:[%s281 + $0xe8] sm:$0xff]
        %v318 = vld [vmem:[%s281 + $0xf0] sm:$0xff]
        %v319 = vld [vmem:[%s281 + $0xf8] sm:$0xf]
        %v320 = vld [vmem:[%s281 + $0xfc] sm:$0xff]
        %v321 = vld [vmem:[%s281 + $0x104] sm:$0xff]
        %v322 = vld [vmem:[%s281 + $0x10c] sm:$0xff]
        %v323 = vld [vmem:[%s281 + $0x114] sm:$0xf]
        %v324 = vld [vmem:[%s281 + $0x118] sm:$0xff]
        %v325 = vld [vmem:[%s281 + $0x120] sm:$0xff]
        %v326 = vld [vmem:[%s281 + $0x128] sm:$0xff]
        %v327 = vld [vmem:[%s281 + $0x130] sm:$0xf]
        %v328 = vld [vmem:[%s281 + $0x134] sm:$0xff]
        %v329 = vld [vmem:[%s281 + $0x13c] sm:$0xff]
        %v330 = vld [vmem:[%s281 + $0x144] sm:$0xff]
        %v331 = vld [vmem:[%s281 + $0x14c] sm:$0xf]
        %v332 = vld [vmem:[%s281 + $0x150] sm:$0xff]
        %v333 = vld [vmem:[%s281 + $0x158] sm:$0xff]
        %v334 = vld [vmem:[%s281 + $0x160] sm:$0xff]
        %v335 = vld [vmem:[%s281 + $0x168] sm:$0xf]
        %v336 = vld [vmem:[%s281 + $0x16c] sm:$0xff]
        %v337 = vld [vmem:[%s281 + $0x174] sm:$0xff]
        %v338 = vld [vmem:[%s281 + $0x17c] sm:$0xff]
        %v339 = vld [vmem:[%s281 + $0x184] sm:$0xf]
        %v340 = vld [vmem:[%s281 + $0x188] sm:$0xff]
        %v341 = vld [vmem:[%s281 + $0x190] sm:$0xff]
        %v342 = vld [vmem:[%s281 + $0x198] sm:$0xff]
        %v343 = vld [vmem:[%s281 + $0x1a0] sm:$0xf]
        %v344 = vld [vmem:[%s281 + $0x1a4] sm:$0xff]
        %v345 = vld [vmem:[%s281 + $0x1ac] sm:$0xff]
        %v346 = vld [vmem:[%s281 + $0x1b4] sm:$0xff]
        %v347 = vld [vmem:[%s281 + $0x1bc] sm:$0xf]
        %v348 = vld [vmem:[%s1] sm:$0xf]
        %v349 = vld [vmem:[%s1 + $0x4] sm:$0xf]
        %v350 = vld [vmem:[%s1 + $0x8] sm:$0xf]
        %v351 = vld [vmem:[%s1 + $0xc] sm:$0xf]
        %v352 = vld [vmem:[%s1 + $0x10] sm:$0xf]
        %v353 = vld [vmem:[%s1 + $0x14] sm:$0xf]
        %v354 = vld [vmem:[%s1 + $0x18] sm:$0xf]
        %v355 = vld [vmem:[%s1 + $0x1c] sm:$0xf]
        %v356 = vld [vmem:[%s1 + $0x20] sm:$0xf]
        %v357 = vld [vmem:[%s1 + $0x24] sm:$0xf]
        %v358 = vld [vmem:[%s1 + $0x28] sm:$0xf]
        %v359 = vld [vmem:[%s1 + $0x2c] sm:$0xf]
        %v360 = vld [vmem:[%s1 + $0x30] sm:$0xf]
        %v361 = vld [vmem:[%s1 + $0x34] sm:$0xf]
        %v362 = vld [vmem:[%s1 + $0x38] sm:$0xf]
        %v363 = vld [vmem:[%s1 + $0x3c] sm:$0xf]
        %v364 = vld [vmem:[%s1 + $0x40] sm:$0xf]
        %v365 = vld [vmem:[%s1 + $0x44] sm:$0xf]
        %v366 = vld [vmem:[%s1 + $0x48] sm:$0xf]
        %v367 = vld [vmem:[%s1 + $0x4c] sm:$0xf]
        %v368 = vld [vmem:[%s1 + $0x50] sm:$0xf]
        %v369 = vld [vmem:[%s1 + $0x54] sm:$0xf]
        %v370 = vld [vmem:[%s1 + $0x58] sm:$0xf]
        %v371 = vld [vmem:[%s1 + $0x5c] sm:$0xf]
        %v372 = vld [vmem:[%s1 + $0x60] sm:$0xf]
        %v373 = vld [vmem:[%s1 + $0x64] sm:$0xf]
        %v374 = vld [vmem:[%s1 + $0x68] sm:$0xf]
        %v375 = vld [vmem:[%s1 + $0x6c] sm:$0xf]
        %v376 = vld [vmem:[%s1 + $0x70] sm:$0xf]
        %v377 = vld [vmem:[%s1 + $0x74] sm:$0xf]
        %v378 = vld [vmem:[%s1 + $0x78] sm:$0xf]
        %v379 = vld [vmem:[%s1 + $0x7c] sm:$0xf]
        %v380 = vld [vmem:[%s1 + $0x80] sm:$0xf]
        %v381 = vld [vmem:[%s1 + $0x84] sm:$0xf]
        %v382 = vld [vmem:[%s1 + $0x88] sm:$0xf]
        %v383 = vld [vmem:[%s1 + $0x8c] sm:$0xf]
        %v384 = vld [vmem:[%s1 + $0x90] sm:$0xf]
        %v385 = vld [vmem:[%s1 + $0x94] sm:$0xf]
        %v386 = vld [vmem:[%s1 + $0x98] sm:$0xf]
        %v387 = vld [vmem:[%s1 + $0x9c] sm:$0xf]
        %v388 = vld [vmem:[%s1 + $0xa0] sm:$0xf]
        %v389 = vld [vmem:[%s1 + $0xa4] sm:$0xf]
        %v390 = vld [vmem:[%s1 + $0xa8] sm:$0xf]
        %v391 = vld [vmem:[%s1 + $0xac] sm:$0xf]
        %v392 = vld [vmem:[%s1 + $0xb0] sm:$0xf]
        %v393 = vld [vmem:[%s1 + $0xb4] sm:$0xf]
        %v394 = vld [vmem:[%s1 + $0xb8] sm:$0xf]
        %v395 = vld [vmem:[%s1 + $0xbc] sm:$0xf]
        %v396 = vld [vmem:[%s1 + $0xc0] sm:$0xf]
        %v397 = vld [vmem:[%s1 + $0xc4] sm:$0xf]
        %v398 = vld [vmem:[%s1 + $0xc8] sm:$0xf]
        %v399 = vld [vmem:[%s1 + $0xcc] sm:$0xf]
        %v400 = vld [vmem:[%s1 + $0xd0] sm:$0xf]
        %v401 = vld [vmem:[%s1 + $0xd4] sm:$0xf]
        %v402 = vld [vmem:[%s1 + $0xd8] sm:$0xf]
        %v403 = vld [vmem:[%s1 + $0xdc] sm:$0xf]
        %v404 = vld [vmem:[%s1 + $0xe0] sm:$0xf]
        %v405 = vld [vmem:[%s1 + $0xe4] sm:$0xf]
        %v406 = vld [vmem:[%s1 + $0xe8] sm:$0xf]
        %v407 = vld [vmem:[%s1 + $0xec] sm:$0xf]
        %v408 = vld [vmem:[%s1 + $0xf0] sm:$0xf]
        %v409 = vld [vmem:[%s1 + $0xf4] sm:$0xf]
        %v410 = vld [vmem:[%s1 + $0xf8] sm:$0xf]
        %v411 = vld [vmem:[%s1 + $0xfc] sm:$0xf]
        %v412 = vld [vmem:[%s1 + $0x100] sm:$0xf]
        %v413 = vld [vmem:[%s1 + $0x104] sm:$0xf]
        %v414 = vld [vmem:[%s1 + $0x108] sm:$0xf]
        %v415 = vld [vmem:[%s1 + $0x10c] sm:$0xf]
        %v416 = vld [vmem:[%s1 + $0x110] sm:$0xf]
        %v417 = vld [vmem:[%s1 + $0x114] sm:$0xf]
        %v418 = vld [vmem:[%s1 + $0x118] sm:$0xf]
        %v419 = vld [vmem:[%s1 + $0x11c] sm:$0xf]
        %v420 = vld [vmem:[%s1 + $0x120] sm:$0xf]
        %v421 = vld [vmem:[%s1 + $0x124] sm:$0xf]
        %v422 = vld [vmem:[%s1 + $0x128] sm:$0xf]
        %v423 = vld [vmem:[%s1 + $0x12c] sm:$0xf]
        %v424 = vld [vmem:[%s1 + $0x130] sm:$0xf]
        %v425 = vld [vmem:[%s1 + $0x134] sm:$0xf]
        %v426 = vld [vmem:[%s1 + $0x138] sm:$0xf]
        %v427 = vld [vmem:[%s1 + $0x13c] sm:$0xf]
        %v428 = vld [vmem:[%s1 + $0x140] sm:$0xf]
        %v429 = vld [vmem:[%s1 + $0x144] sm:$0xf]
        %v430 = vld [vmem:[%s1 + $0x148] sm:$0xf]
        %v431 = vld [vmem:[%s1 + $0x14c] sm:$0xf]
        %v432 = vld [vmem:[%s1 + $0x150] sm:$0xf]
        %v433 = vld [vmem:[%s1 + $0x154] sm:$0xf]
        %v434 = vld [vmem:[%s1 + $0x158] sm:$0xf]
        %v435 = vld [vmem:[%s1 + $0x15c] sm:$0xf]
        %v436 = vld [vmem:[%s1 + $0x160] sm:$0xf]
        %v437 = vld [vmem:[%s1 + $0x164] sm:$0xf]
        %v438 = vld [vmem:[%s1 + $0x168] sm:$0xf]
        %v439 = vld [vmem:[%s1 + $0x16c] sm:$0xf]
        %v440 = vld [vmem:[%s1 + $0x170] sm:$0xf]
        %v441 = vld [vmem:[%s1 + $0x174] sm:$0xf]
        %v442 = vld [vmem:[%s1 + $0x178] sm:$0xf]
        %v443 = vld [vmem:[%s1 + $0x17c] sm:$0xf]
        %v444 = vld [vmem:[%s1 + $0x180] sm:$0xf]
        %v445 = vld [vmem:[%s1 + $0x184] sm:$0xf]
        %v446 = vld [vmem:[%s1 + $0x188] sm:$0xf]
        %v447 = vld [vmem:[%s1 + $0x18c] sm:$0xf]
        %v448 = vld [vmem:[%s1 + $0x190] sm:$0xf]
        %v449 = vld [vmem:[%s1 + $0x194] sm:$0xf]
        %v450 = vld [vmem:[%s1 + $0x198] sm:$0x3]
        %v451 = vld [vmem:[%s2] sm:$0x1]
        %v453 = vlaneseq
        %v454 = vshrl.u32 %v453, 7
        %v455 = vsub.s32 0, %v454
        %v456 = vrot.slane %v451, %v455
        %v522 = vunpack.c.l.b16 %v284
        %v523 = vunpack.c.h.b16 %v284
        %v524 = vunpack.c.l.b16 %v285
        %v525 = vunpack.c.h.b16 %v285
        %v526 = vunpack.c.l.b16 %v286
        %v527 = vunpack.c.h.b16 %v286
        %v528 = vunpack.c.l.b16 %v287
        %v529 = vunpack.c.l.b16 %v288
        %v530 = vunpack.c.h.b16 %v288
        %v531 = vunpack.c.l.b16 %v289
        %v532 = vunpack.c.h.b16 %v289
        %v533 = vunpack.c.l.b16 %v290
        %v534 = vunpack.c.h.b16 %v290
        %v535 = vunpack.c.l.b16 %v291
        %v536 = vunpack.c.l.b16 %v292
        %v537 = vunpack.c.h.b16 %v292
        %v538 = vunpack.c.l.b16 %v293
        %v539 = vunpack.c.h.b16 %v293
        %v540 = vunpack.c.l.b16 %v294
        %v541 = vunpack.c.h.b16 %v294
        %v542 = vunpack.c.l.b16 %v295
        %v543 = vunpack.c.l.b16 %v296
        %v544 = vunpack.c.h.b16 %v296
        %v545 = vunpack.c.l.b16 %v297
        %v546 = vunpack.c.h.b16 %v297
        %v547 = vunpack.c.l.b16 %v298
        %v548 = vunpack.c.h.b16 %v298
        %v549 = vunpack.c.l.b16 %v299
        %v550 = vunpack.c.l.b16 %v300
        %v551 = vunpack.c.h.b16 %v300
        %v552 = vunpack.c.l.b16 %v301
        %v553 = vunpack.c.h.b16 %v301
        %v554 = vunpack.c.l.b16 %v302
        %v555 = vunpack.c.h.b16 %v302
        %v556 = vunpack.c.l.b16 %v303
        %v557 = vunpack.c.l.b16 %v304
        %v558 = vunpack.c.h.b16 %v304
        %v559 = vunpack.c.l.b16 %v305
        %v560 = vunpack.c.h.b16 %v305
        %v561 = vunpack.c.l.b16 %v306
        %v562 = vunpack.c.h.b16 %v306
        %v563 = vunpack.c.l.b16 %v307
        %v564 = vunpack.c.l.b16 %v308
        %v565 = vunpack.c.h.b16 %v308
        %v566 = vunpack.c.l.b16 %v309
        %v567 = vunpack.c.h.b16 %v309
        %v568 = vunpack.c.l.b16 %v310
        %v569 = vunpack.c.h.b16 %v310
        %v570 = vunpack.c.l.b16 %v311
        %v571 = vunpack.c.l.b16 %v312
        %v572 = vunpack.c.h.b16 %v312
        %v573 = vunpack.c.l.b16 %v313
        %v574 = vunpack.c.h.b16 %v313
        %v575 = vunpack.c.l.b16 %v314
        %v576 = vunpack.c.h.b16 %v314
        %v577 = vunpack.c.l.b16 %v315
        %v578 = vunpack.c.l.b16 %v316
        %v579 = vunpack.c.h.b16 %v316
        %v580 = vunpack.c.l.b16 %v317
        %v581 = vunpack.c.h.b16 %v317
        %v582 = vunpack.c.l.b16 %v318
        %v583 = vunpack.c.h.b16 %v318
        %v584 = vunpack.c.l.b16 %v319
        %v585 = vunpack.c.l.b16 %v320
        %v586 = vunpack.c.h.b16 %v320
        %v587 = vunpack.c.l.b16 %v321
        %v588 = vunpack.c.h.b16 %v321
        %v589 = vunpack.c.l.b16 %v322
        %v590 = vunpack.c.h.b16 %v322
        %v591 = vunpack.c.l.b16 %v323
        %v592 = vunpack.c.l.b16 %v324
        %v593 = vunpack.c.h.b16 %v324
        %v594 = vunpack.c.l.b16 %v325
        %v595 = vunpack.c.h.b16 %v325
        %v596 = vunpack.c.l.b16 %v326
        %v597 = vunpack.c.h.b16 %v326
        %v598 = vunpack.c.l.b16 %v327
        %v599 = vunpack.c.l.b16 %v328
        %v600 = vunpack.c.h.b16 %v328
        %v601 = vunpack.c.l.b16 %v329
        %v602 = vunpack.c.h.b16 %v329
        %v603 = vunpack.c.l.b16 %v330
        %v604 = vunpack.c.h.b16 %v330
        %v605 = vunpack.c.l.b16 %v331
        %v606 = vunpack.c.l.b16 %v332
        %v607 = vunpack.c.h.b16 %v332
        %v608 = vunpack.c.l.b16 %v333
        %v609 = vunpack.c.h.b16 %v333
        %v610 = vunpack.c.l.b16 %v334
        %v611 = vunpack.c.h.b16 %v334
        %v612 = vunpack.c.l.b16 %v335
        %v613 = vunpack.c.l.b16 %v336
        %v614 = vunpack.c.h.b16 %v336
        %v615 = vunpack.c.l.b16 %v337
        %v616 = vunpack.c.h.b16 %v337
        %v617 = vunpack.c.l.b16 %v338
        %v618 = vunpack.c.h.b16 %v338
        %v619 = vunpack.c.l.b16 %v339
        %v620 = vunpack.c.l.b16 %v340
        %v621 = vunpack.c.h.b16 %v340
        %v622 = vunpack.c.l.b16 %v341
        %v623 = vunpack.c.h.b16 %v341
        %v624 = vunpack.c.l.b16 %v342
        %v625 = vunpack.c.h.b16 %v342
        %v626 = vunpack.c.l.b16 %v343
        %v627 = vunpack.c.l.b16 %v344
        %v628 = vunpack.c.h.b16 %v344
        %v629 = vunpack.c.l.b16 %v345
        %v630 = vunpack.c.h.b16 %v345
        %v631 = vunpack.c.l.b16 %v346
        %v632 = vunpack.c.h.b16 %v346
        %v633 = vunpack.c.l.b16 %v347
        %v634 = vpack.c.b16 %v529, %v522
        %v635 = vpack.c.b16 %v530, %v523
        %v636 = vpack.c.b16 %v531, %v524
        %v637 = vpack.c.b16 %v532, %v525
        %v638 = vpack.c.b16 %v533, %v526
        %v639 = vpack.c.b16 %v534, %v527
        %v640 = vpack.c.b16 %v535, %v528
        %v641 = vpack.c.b16 %v543, %v536
        %v642 = vpack.c.b16 %v544, %v537
        %v643 = vpack.c.b16 %v545, %v538
        %v644 = vpack.c.b16 %v546, %v539
        %v645 = vpack.c.b16 %v547, %v540
        %v646 = vpack.c.b16 %v548, %v541
        %v647 = vpack.c.b16 %v549, %v542
        %v648 = vpack.c.b16 %v557, %v550
        %v649 = vpack.c.b16 %v558, %v551
        %v650 = vpack.c.b16 %v559, %v552
        %v651 = vpack.c.b16 %v560, %v553
        %v652 = vpack.c.b16 %v561, %v554
        %v653 = vpack.c.b16 %v562, %v555
        %v654 = vpack.c.b16 %v563, %v556
        %v655 = vpack.c.b16 %v571, %v564
        %v656 = vpack.c.b16 %v572, %v565
        %v657 = vpack.c.b16 %v573, %v566
        %v658 = vpack.c.b16 %v574, %v567
        %v659 = vpack.c.b16 %v575, %v568
        %v660 = vpack.c.b16 %v576, %v569
        %v661 = vpack.c.b16 %v577, %v570
        %v662 = vpack.c.b16 %v585, %v578
        %v663 = vpack.c.b16 %v586, %v579
        %v664 = vpack.c.b16 %v587, %v580
        %v665 = vpack.c.b16 %v588, %v581
        %v666 = vpack.c.b16 %v589, %v582
        %v667 = vpack.c.b16 %v590, %v583
        %v668 = vpack.c.b16 %v591, %v584
        %v669 = vpack.c.b16 %v599, %v592
        %v670 = vpack.c.b16 %v600, %v593
        %v671 = vpack.c.b16 %v601, %v594
        %v672 = vpack.c.b16 %v602, %v595
        %v673 = vpack.c.b16 %v603, %v596
        %v674 = vpack.c.b16 %v604, %v597
        %v675 = vpack.c.b16 %v605, %v598
        %v676 = vpack.c.b16 %v613, %v606
        %v677 = vpack.c.b16 %v614, %v607
        %v678 = vpack.c.b16 %v615, %v608
        %v679 = vpack.c.b16 %v616, %v609
        %v680 = vpack.c.b16 %v617, %v610
        %v681 = vpack.c.b16 %v618, %v611
        %v682 = vpack.c.b16 %v619, %v612
        %v683 = vpack.c.b16 %v627, %v620
        %v684 = vpack.c.b16 %v628, %v621
        %v685 = vpack.c.b16 %v629, %v622
        %v686 = vpack.c.b16 %v630, %v623
        %v687 = vpack.c.b16 %v631, %v624
        %v688 = vpack.c.b16 %v632, %v625
        %v689 = vpack.c.b16 %v633, %v626
        %v841 = vunpack.c.l.b16 %v348
        %v842 = vunpack.c.l.b16 %v349
        %v843 = vunpack.c.l.b16 %v350
        %v844 = vunpack.c.l.b16 %v351
        %v845 = vunpack.c.l.b16 %v352
        %v846 = vunpack.c.l.b16 %v353
        %v847 = vunpack.c.l.b16 %v354
        %v848 = vunpack.c.l.b16 %v355
        %v849 = vunpack.c.l.b16 %v356
        %v850 = vunpack.c.l.b16 %v357
        %v851 = vunpack.c.l.b16 %v358
        %v852 = vunpack.c.l.b16 %v359
        %v853 = vunpack.c.l.b16 %v360
        %v854 = vunpack.c.l.b16 %v361
        %v855 = vunpack.c.l.b16 %v362
        %v856 = vunpack.c.l.b16 %v363
        %v857 = vunpack.c.l.b16 %v364
        %v858 = vunpack.c.l.b16 %v365
        %v859 = vunpack.c.l.b16 %v366
        %v860 = vunpack.c.l.b16 %v367
        %v861 = vunpack.c.l.b16 %v368
        %v862 = vunpack.c.l.b16 %v369
        %v863 = vunpack.c.l.b16 %v370
        %v864 = vunpack.c.l.b16 %v371
        %v865 = vunpack.c.l.b16 %v372
        %v866 = vunpack.c.l.b16 %v373
        %v867 = vunpack.c.l.b16 %v374
        %v868 = vunpack.c.l.b16 %v375
        %v869 = vunpack.c.l.b16 %v376
        %v870 = vunpack.c.l.b16 %v377
        %v871 = vunpack.c.l.b16 %v378
        %v872 = vunpack.c.l.b16 %v379
        %v873 = vunpack.c.l.b16 %v380
        %v874 = vunpack.c.l.b16 %v381
        %v875 = vunpack.c.l.b16 %v382
        %v876 = vunpack.c.l.b16 %v383
        %v877 = vunpack.c.l.b16 %v384
        %v878 = vunpack.c.l.b16 %v385
        %v879 = vunpack.c.l.b16 %v386
        %v880 = vunpack.c.l.b16 %v387
        %v881 = vunpack.c.l.b16 %v388
        %v882 = vunpack.c.l.b16 %v389
        %v883 = vunpack.c.l.b16 %v390
        %v884 = vunpack.c.l.b16 %v391
        %v885 = vunpack.c.l.b16 %v392
        %v886 = vunpack.c.l.b16 %v393
        %v887 = vunpack.c.l.b16 %v394
        %v888 = vunpack.c.l.b16 %v395
        %v889 = vunpack.c.l.b16 %v396
        %v890 = vunpack.c.l.b16 %v397
        %v891 = vunpack.c.l.b16 %v398
        %v892 = vunpack.c.l.b16 %v399
        %v893 = vunpack.c.l.b16 %v400
        %v894 = vunpack.c.l.b16 %v401
        %v895 = vunpack.c.l.b16 %v402
        %v896 = vunpack.c.l.b16 %v403
        %v897 = vunpack.c.l.b16 %v404
        %v898 = vunpack.c.l.b16 %v405
        %v899 = vunpack.c.l.b16 %v406
        %v900 = vunpack.c.l.b16 %v407
        %v901 = vunpack.c.l.b16 %v408
        %v902 = vunpack.c.l.b16 %v409
        %v903 = vunpack.c.l.b16 %v410
        %v904 = vunpack.c.l.b16 %v411
        %v905 = vunpack.c.l.b16 %v412
        %v906 = vunpack.c.l.b16 %v413
        %v907 = vunpack.c.l.b16 %v414
        %v908 = vunpack.c.l.b16 %v415
        %v909 = vunpack.c.l.b16 %v416
        %v910 = vunpack.c.l.b16 %v417
        %v911 = vunpack.c.l.b16 %v418
        %v912 = vunpack.c.l.b16 %v419
        %v913 = vunpack.c.l.b16 %v420
        %v914 = vunpack.c.l.b16 %v421
        %v915 = vunpack.c.l.b16 %v422
        %v916 = vunpack.c.l.b16 %v423
        %v917 = vunpack.c.l.b16 %v424
        %v918 = vunpack.c.l.b16 %v425
        %v919 = vunpack.c.l.b16 %v426
        %v920 = vunpack.c.l.b16 %v427
        %v921 = vunpack.c.l.b16 %v428
        %v922 = vunpack.c.l.b16 %v429
        %v923 = vunpack.c.l.b16 %v430
        %v924 = vunpack.c.l.b16 %v431
        %v925 = vunpack.c.l.b16 %v432
        %v926 = vunpack.c.l.b16 %v433
        %v927 = vunpack.c.l.b16 %v434
        %v928 = vunpack.c.l.b16 %v435
        %v929 = vunpack.c.l.b16 %v436
        %v930 = vunpack.c.l.b16 %v437
        %v931 = vunpack.c.l.b16 %v438
        %v932 = vunpack.c.l.b16 %v439
        %v933 = vunpack.c.l.b16 %v440
        %v934 = vunpack.c.l.b16 %v441
        %v935 = vunpack.c.l.b16 %v442
        %v936 = vunpack.c.l.b16 %v443
        %v937 = vunpack.c.l.b16 %v444
        %v938 = vunpack.c.l.b16 %v445
        %v939 = vunpack.c.l.b16 %v446
        %v940 = vunpack.c.l.b16 %v447
        %v941 = vunpack.c.l.b16 %v448
        %v942 = vunpack.c.l.b16 %v449
        %v943 = vunpack.c.l.b16 %v450
        %v944 = vpack.c.b16 %v842, %v841
        %v945 = vpack.c.b16 %v844, %v843
        %v946 = vpack.c.b16 %v846, %v845
        %v947 = vpack.c.b16 %v848, %v847
        %v948 = vpack.c.b16 %v850, %v849
        %v949 = vpack.c.b16 %v852, %v851
        %v950 = vpack.c.b16 %v854, %v853
        %v951 = vpack.c.b16 %v856, %v855
        %v952 = vpack.c.b16 %v858, %v857
        %v953 = vpack.c.b16 %v860, %v859
        %v954 = vpack.c.b16 %v862, %v861
        %v955 = vpack.c.b16 %v864, %v863
        %v956 = vpack.c.b16 %v866, %v865
        %v957 = vpack.c.b16 %v868, %v867
        %v958 = vpack.c.b16 %v870, %v869
        %v959 = vpack.c.b16 %v872, %v871
        %v960 = vpack.c.b16 %v874, %v873
        %v961 = vpack.c.b16 %v876, %v875
        %v962 = vpack.c.b16 %v878, %v877
        %v963 = vpack.c.b16 %v880, %v879
        %v964 = vpack.c.b16 %v882, %v881
        %v965 = vpack.c.b16 %v884, %v883
        %v966 = vpack.c.b16 %v886, %v885
        %v967 = vpack.c.b16 %v888, %v887
        %v968 = vpack.c.b16 %v890, %v889
        %v969 = vpack.c.b16 %v892, %v891
        %v970 = vpack.c.b16 %v894, %v893
        %v971 = vpack.c.b16 %v896, %v895
        %v972 = vpack.c.b16 %v898, %v897
        %v973 = vpack.c.b16 %v900, %v899
        %v974 = vpack.c.b16 %v902, %v901
        %v975 = vpack.c.b16 %v904, %v903
        %v976 = vpack.c.b16 %v906, %v905
        %v977 = vpack.c.b16 %v908, %v907
        %v978 = vpack.c.b16 %v910, %v909
        %v979 = vpack.c.b16 %v912, %v911
        %v980 = vpack.c.b16 %v914, %v913
        %v981 = vpack.c.b16 %v916, %v915
        %v982 = vpack.c.b16 %v918, %v917
        %v983 = vpack.c.b16 %v920, %v919
        %v984 = vpack.c.b16 %v922, %v921
        %v985 = vpack.c.b16 %v924, %v923
        %v986 = vpack.c.b16 %v926, %v925
        %v987 = vpack.c.b16 %v928, %v927
        %v988 = vpack.c.b16 %v930, %v929
        %v989 = vpack.c.b16 %v932, %v931
        %v990 = vpack.c.b16 %v934, %v933
        %v991 = vpack.c.b16 %v936, %v935
        %v992 = vpack.c.b16 %v938, %v937
        %v993 = vpack.c.b16 %v940, %v939
        %v994 = vpack.c.b16 %v942, %v941
        %v995 = vpack.c.b16 %v943, %v943
        %vm1047 = vcmask 416768
        %v1049 = vsel %vm1047, %v640, 0
        %v1052 = vsel %vm1047, %v647, 0
        %v1055 = vsel %vm1047, %v654, 0
        %v1058 = vsel %vm1047, %v661, 0
        %v1061 = vsel %vm1047, %v668, 0
        %v1064 = vsel %vm1047, %v675, 0
        %v1067 = vsel %vm1047, %v682, 0
        %v1070 = vsel %vm1047, %v689, 0
        %vm1072 = vcmask 1040384
        %vm1073 = vcmask 1041408
        %v1074 = vsel %vm1072, 4294967295, 65535
        %v1075 = vsel %vm1073, %v1074, 0
        %v1077 = vand.u32 %v995, %v1075
        %1079 = vmatprep.subr.bf16.mxu0 0
        %1080 = vmatpush1.bf16.msra.mxu0 %v951
        %1081 = vmatprep.subr.bf16.mxu0 0
        %1082 = vmatpush1.bf16.msra.mxu0 %v950
        %1083 = vmatprep.subr.bf16.mxu0 0
        %1084 = vmatpush1.bf16.msra.mxu0 %v949
        %1085 = vmatprep.subr.bf16.mxu0 0
        %1086 = vmatpush1.bf16.msra.mxu0 %v948
        %1087 = vmatprep.subr.bf16.mxu0 0
        %1088 = vmatpush1.bf16.msra.mxu0 %v947
        %1089 = vmatprep.subr.bf16.mxu0 0
        %1090 = vmatpush1.bf16.msra.mxu0 %v946
        %1091 = vmatprep.subr.bf16.mxu0 0
        %1092 = vmatpush1.bf16.msra.mxu0 %v945
        %1093 = vmatprep.subr.bf16.mxu0 0
        %1094 = vmatpush1.bf16.msra.mxu0 %v944
        %1095 = vmatprep.subr.bf16.mxu0 0
        %1096 = vmatpush2.bf16.msra.mxu0 %v959
        %1097 = vmatprep.subr.bf16.mxu0 0
        %1098 = vmatpush2.bf16.msra.mxu0 %v958
        %1099 = vmatprep.subr.bf16.mxu0 0
        %1100 = vmatpush2.bf16.msra.mxu0 %v957
        %1101 = vmatprep.subr.bf16.mxu0 0
        %1102 = vmatpush2.bf16.msra.mxu0 %v956
        %1103 = vmatprep.subr.bf16.mxu0 0
        %1104 = vmatpush2.bf16.msra.mxu0 %v955
        %1105 = vmatprep.subr.bf16.mxu0 0
        %1106 = vmatpush2.bf16.msra.mxu0 %v954
        %1107 = vmatprep.subr.bf16.mxu0 0
        %1108 = vmatpush2.bf16.msra.mxu0 %v953
        %1109 = vmatprep.subr.bf16.mxu0 0
        %1110 = vmatpush2.bf16.msra.mxu0 %v952
        %1111 = vmatprep.mubr.bf16.mxu0 %v635
        %1112 = vmatmul.mubr.bf16.gmra.mxu0 %v634
        %v1113 = vpop.f32.mrf.mxu0
        %v1114 = vadd.f32 %v456, %v1113
        %v1115 = vpop.f32.mrf.mxu0
        %v1116 = vpop.f32.mrf.mxu0
        %v1117 = vadd.f32 %v456, %v1116
        %v1118 = vpop.f32.mrf.mxu0
        %1119 = vmatprep.mubr.bf16.mxu0 %v642
        %1120 = vmatmul.mubr.bf16.gmra.mxu0 %v641
        %v1121 = vpop.f32.mrf.mxu0
        %v1122 = vadd.f32 %v456, %v1121
        %v1123 = vpop.f32.mrf.mxu0
        %v1124 = vpop.f32.mrf.mxu0
        %v1125 = vadd.f32 %v456, %v1124
        %v1126 = vpop.f32.mrf.mxu0
        %1127 = vmatprep.mubr.bf16.mxu0 %v649
        %1128 = vmatmul.mubr.bf16.gmra.mxu0 %v648
        %v1129 = vpop.f32.mrf.mxu0
        %v1130 = vadd.f32 %v456, %v1129
        %v1131 = vpop.f32.mrf.mxu0
        %v1132 = vpop.f32.mrf.mxu0
        %v1133 = vadd.f32 %v456, %v1132
        %v1134 = vpop.f32.mrf.mxu0
        %1135 = vmatprep.mubr.bf16.mxu0 %v656
        %1136 = vmatmul.mubr.bf16.gmra.mxu0 %v655
        %v1137 = vpop.f32.mrf.mxu0
        %v1138 = vadd.f32 %v456, %v1137
        %v1139 = vpop.f32.mrf.mxu0
        %v1140 = vpop.f32.mrf.mxu0
        %v1141 = vadd.f32 %v456, %v1140
        %v1142 = vpop.f32.mrf.mxu0
        %1143 = vmatprep.mubr.bf16.mxu0 %v663
        %1144 = vmatmul.mubr.bf16.gmra.mxu0 %v662
        %v1145 = vpop.f32.mrf.mxu0
        %v1146 = vadd.f32 %v456, %v1145
        %v1147 = vpop.f32.mrf.mxu0
        %v1148 = vpop.f32.mrf.mxu0
        %v1149 = vadd.f32 %v456, %v1148
        %v1150 = vpop.f32.mrf.mxu0
        %1151 = vmatprep.mubr.bf16.mxu0 %v670
        %1152 = vmatmul.mubr.bf16.gmra.mxu0 %v669
        %v1153 = vpop.f32.mrf.mxu0
        %v1154 = vadd.f32 %v456, %v1153
        %v1155 = vpop.f32.mrf.mxu0
        %v1156 = vpop.f32.mrf.mxu0
        %v1157 = vadd.f32 %v456, %v1156
        %v1158 = vpop.f32.mrf.mxu0
        %1159 = vmatprep.mubr.bf16.mxu0 %v677
        %1160 = vmatmul.mubr.bf16.gmra.mxu0 %v676
        %v1161 = vpop.f32.mrf.mxu0
        %v1162 = vadd.f32 %v456, %v1161
        %v1163 = vpop.f32.mrf.mxu0
        %v1164 = vpop.f32.mrf.mxu0
        %v1165 = vadd.f32 %v456, %v1164
        %v1166 = vpop.f32.mrf.mxu0
        %1167 = vmatprep.mubr.bf16.mxu0 %v684
        %1168 = vmatmul.mubr.bf16.gmra.mxu0 %v683
        %v1169 = vpop.f32.mrf.mxu0
        %v1170 = vadd.f32 %v456, %v1169
        %v1171 = vpop.f32.mrf.mxu0
        %v1172 = vpop.f32.mrf.mxu0
        %v1173 = vadd.f32 %v456, %v1172
        %v1174 = vpop.f32.mrf.mxu0
        %1175 = vdwg.mxu0
        %1176 = vmatprep.subr.bf16.mxu0 0
        %1177 = vmatpush1.bf16.msra.mxu0 %v967
        %1178 = vmatprep.subr.bf16.mxu0 0
        %1179 = vmatpush1.bf16.msra.mxu0 %v966
        %1180 = vmatprep.subr.bf16.mxu0 0
        %1181 = vmatpush1.bf16.msra.mxu0 %v965
        %1182 = vmatprep.subr.bf16.mxu0 0
        %1183 = vmatpush1.bf16.msra.mxu0 %v964
        %1184 = vmatprep.subr.bf16.mxu0 0
        %1185 = vmatpush1.bf16.msra.mxu0 %v963
        %1186 = vmatprep.subr.bf16.mxu0 0
        %1187 = vmatpush1.bf16.msra.mxu0 %v962
        %1188 = vmatprep.subr.bf16.mxu0 0
        %1189 = vmatpush1.bf16.msra.mxu0 %v961
        %1190 = vmatprep.subr.bf16.mxu0 0
        %1191 = vmatpush1.bf16.msra.mxu0 %v960
        %1192 = vmatprep.subr.bf16.mxu0 0
        %1193 = vmatpush2.bf16.msra.mxu0 %v975
        %1194 = vmatprep.subr.bf16.mxu0 0
        %1195 = vmatpush2.bf16.msra.mxu0 %v974
        %1196 = vmatprep.subr.bf16.mxu0 0
        %1197 = vmatpush2.bf16.msra.mxu0 %v973
        %1198 = vmatprep.subr.bf16.mxu0 0
        %1199 = vmatpush2.bf16.msra.mxu0 %v972
        %1200 = vmatprep.subr.bf16.mxu0 0
        %1201 = vmatpush2.bf16.msra.mxu0 %v971
        %1202 = vmatprep.subr.bf16.mxu0 0
        %1203 = vmatpush2.bf16.msra.mxu0 %v970
        %1204 = vmatprep.subr.bf16.mxu0 0
        %1205 = vmatpush2.bf16.msra.mxu0 %v969
        %1206 = vmatprep.subr.bf16.mxu0 0
        %1207 = vmatpush2.bf16.msra.mxu0 %v968
        %1208 = vmatprep.mubr.bf16.mxu0 %v637
        %1209 = vmatmul.mubr.bf16.gmra.mxu0 %v636
        %v1210 = vpop.f32.mrf.mxu0
        %v1211 = vadd.f32 %v1114, %v1210
        %v1212 = vpop.f32.mrf.mxu0
        %v1213 = vpop.f32.mrf.mxu0
        %v1214 = vadd.f32 %v1117, %v1213
        %v1215 = vpop.f32.mrf.mxu0
        %1216 = vmatprep.mubr.bf16.mxu0 %v644
        %1217 = vmatmul.mubr.bf16.gmra.mxu0 %v643
        %v1218 = vpop.f32.mrf.mxu0
        %v1219 = vadd.f32 %v1122, %v1218
        %v1220 = vpop.f32.mrf.mxu0
        %v1221 = vpop.f32.mrf.mxu0
        %v1222 = vadd.f32 %v1125, %v1221
        %v1223 = vpop.f32.mrf.mxu0
        %1224 = vmatprep.mubr.bf16.mxu0 %v651
        %1225 = vmatmul.mubr.bf16.gmra.mxu0 %v650
        %v1226 = vpop.f32.mrf.mxu0
        %v1227 = vadd.f32 %v1130, %v1226
        %v1228 = vpop.f32.mrf.mxu0
        %v1229 = vpop.f32.mrf.mxu0
        %v1230 = vadd.f32 %v1133, %v1229
        %v1231 = vpop.f32.mrf.mxu0
        %1232 = vmatprep.mubr.bf16.mxu0 %v658
        %1233 = vmatmul.mubr.bf16.gmra.mxu0 %v657
        %v1234 = vpop.f32.mrf.mxu0
        %v1235 = vadd.f32 %v1138, %v1234
        %v1236 = vpop.f32.mrf.mxu0
        %v1237 = vpop.f32.mrf.mxu0
        %v1238 = vadd.f32 %v1141, %v1237
        %v1239 = vpop.f32.mrf.mxu0
        %1240 = vmatprep.mubr.bf16.mxu0 %v665
        %1241 = vmatmul.mubr.bf16.gmra.mxu0 %v664
        %v1242 = vpop.f32.mrf.mxu0
        %v1243 = vadd.f32 %v1146, %v1242
        %v1244 = vpop.f32.mrf.mxu0
        %v1245 = vpop.f32.mrf.mxu0
        %v1246 = vadd.f32 %v1149, %v1245
        %v1247 = vpop.f32.mrf.mxu0
        %1248 = vmatprep.mubr.bf16.mxu0 %v672
        %1249 = vmatmul.mubr.bf16.gmra.mxu0 %v671
        %v1250 = vpop.f32.mrf.mxu0
        %v1251 = vadd.f32 %v1154, %v1250
        %v1252 = vpop.f32.mrf.mxu0
        %v1253 = vpop.f32.mrf.mxu0
        %v1254 = vadd.f32 %v1157, %v1253
        %v1255 = vpop.f32.mrf.mxu0
        %1256 = vmatprep.mubr.bf16.mxu0 %v679
        %1257 = vmatmul.mubr.bf16.gmra.mxu0 %v678
        %v1258 = vpop.f32.mrf.mxu0
        %v1259 = vadd.f32 %v1162, %v1258
        %v1260 = vpop.f32.mrf.mxu0
        %v1261 = vpop.f32.mrf.mxu0
        %v1262 = vadd.f32 %v1165, %v1261
        %v1263 = vpop.f32.mrf.mxu0
        %1264 = vmatprep.mubr.bf16.mxu0 %v686
        %1265 = vmatmul.mubr.bf16.gmra.mxu0 %v685
        %v1266 = vpop.f32.mrf.mxu0
        %v1267 = vadd.f32 %v1170, %v1266
        %v1268 = vpop.f32.mrf.mxu0
        %v1269 = vpop.f32.mrf.mxu0
        %v1270 = vadd.f32 %v1173, %v1269
        %v1271 = vpop.f32.mrf.mxu0
        %1272 = vdwg.mxu0
        %1273 = vmatprep.subr.bf16.mxu0 0
        %1274 = vmatpush1.bf16.msra.mxu0 %v983
        %1275 = vmatprep.subr.bf16.mxu0 0
        %1276 = vmatpush1.bf16.msra.mxu0 %v982
        %1277 = vmatprep.subr.bf16.mxu0 0
        %1278 = vmatpush1.bf16.msra.mxu0 %v981
        %1279 = vmatprep.subr.bf16.mxu0 0
        %1280 = vmatpush1.bf16.msra.mxu0 %v980
        %1281 = vmatprep.subr.bf16.mxu0 0
        %1282 = vmatpush1.bf16.msra.mxu0 %v979
        %1283 = vmatprep.subr.bf16.mxu0 0
        %1284 = vmatpush1.bf16.msra.mxu0 %v978
        %1285 = vmatprep.subr.bf16.mxu0 0
        %1286 = vmatpush1.bf16.msra.mxu0 %v977
        %1287 = vmatprep.subr.bf16.mxu0 0
        %1288 = vmatpush1.bf16.msra.mxu0 %v976
        %1289 = vmatprep.subr.bf16.mxu0 0
        %1290 = vmatpush2.bf16.msra.mxu0 %v991
        %1291 = vmatprep.subr.bf16.mxu0 0
        %1292 = vmatpush2.bf16.msra.mxu0 %v990
        %1293 = vmatprep.subr.bf16.mxu0 0
        %1294 = vmatpush2.bf16.msra.mxu0 %v989
        %1295 = vmatprep.subr.bf16.mxu0 0
        %1296 = vmatpush2.bf16.msra.mxu0 %v988
        %1297 = vmatprep.subr.bf16.mxu0 0
        %1298 = vmatpush2.bf16.msra.mxu0 %v987
        %1299 = vmatprep.subr.bf16.mxu0 0
        %1300 = vmatpush2.bf16.msra.mxu0 %v986
        %1301 = vmatprep.subr.bf16.mxu0 0
        %1302 = vmatpush2.bf16.msra.mxu0 %v985
        %1303 = vmatprep.subr.bf16.mxu0 0
        %1304 = vmatpush2.bf16.msra.mxu0 %v984
        %1305 = vmatprep.mubr.bf16.mxu0 %v639
        %1306 = vmatmul.mubr.bf16.gmra.mxu0 %v638
        %v1307 = vpop.f32.mrf.mxu0
        %v1308 = vadd.f32 %v1211, %v1307
        %v1309 = vpop.f32.mrf.mxu0
        %v1310 = vpop.f32.mrf.mxu0
        %v1311 = vadd.f32 %v1214, %v1310
        %v1312 = vpop.f32.mrf.mxu0
        %1313 = vmatprep.mubr.bf16.mxu0 %v646
        %1314 = vmatmul.mubr.bf16.gmra.mxu0 %v645
        %v1315 = vpop.f32.mrf.mxu0
        %v1316 = vadd.f32 %v1219, %v1315
        %v1317 = vpop.f32.mrf.mxu0
        %v1318 = vpop.f32.mrf.mxu0
        %v1319 = vadd.f32 %v1222, %v1318
        %v1320 = vpop.f32.mrf.mxu0
        %1321 = vmatprep.mubr.bf16.mxu0 %v653
        %1322 = vmatmul.mubr.bf16.gmra.mxu0 %v652
        %v1323 = vpop.f32.mrf.mxu0
        %v1324 = vadd.f32 %v1227, %v1323
        %v1325 = vpop.f32.mrf.mxu0
        %v1326 = vpop.f32.mrf.mxu0
        %v1327 = vadd.f32 %v1230, %v1326
        %v1328 = vpop.f32.mrf.mxu0
        %1329 = vmatprep.mubr.bf16.mxu0 %v660
        %1330 = vmatmul.mubr.bf16.gmra.mxu0 %v659
        %v1331 = vpop.f32.mrf.mxu0
        %v1332 = vadd.f32 %v1235, %v1331
        %v1333 = vpop.f32.mrf.mxu0
        %v1334 = vpop.f32.mrf.mxu0
        %v1335 = vadd.f32 %v1238, %v1334
        %v1336 = vpop.f32.mrf.mxu0
        %1337 = vmatprep.mubr.bf16.mxu0 %v667
        %1338 = vmatmul.mubr.bf16.gmra.mxu0 %v666
        %v1339 = vpop.f32.mrf.mxu0
        %v1340 = vadd.f32 %v1243, %v1339
        %v1341 = vpop.f32.mrf.mxu0
        %v1342 = vpop.f32.mrf.mxu0
        %v1343 = vadd.f32 %v1246, %v1342
        %v1344 = vpop.f32.mrf.mxu0
        %1345 = vmatprep.mubr.bf16.mxu0 %v674
        %1346 = vmatmul.mubr.bf16.gmra.mxu0 %v673
        %v1347 = vpop.f32.mrf.mxu0
        %v1348 = vadd.f32 %v1251, %v1347
        %v1349 = vpop.f32.mrf.mxu0
        %v1350 = vpop.f32.mrf.mxu0
        %v1351 = vadd.f32 %v1254, %v1350
        %v1352 = vpop.f32.mrf.mxu0
        %1353 = vmatprep.mubr.bf16.mxu0 %v681
        %1354 = vmatmul.mubr.bf16.gmra.mxu0 %v680
        %v1355 = vpop.f32.mrf.mxu0
        %v1356 = vadd.f32 %v1259, %v1355
        %v1357 = vpop.f32.mrf.mxu0
        %v1358 = vpop.f32.mrf.mxu0
        %v1359 = vadd.f32 %v1262, %v1358
        %v1360 = vpop.f32.mrf.mxu0
        %1361 = vmatprep.mubr.bf16.mxu0 %v688
        %1362 = vmatmul.mubr.bf16.gmra.mxu0 %v687
        %v1363 = vpop.f32.mrf.mxu0
        %v1364 = vadd.f32 %v1267, %v1363
        %v1365 = vpop.f32.mrf.mxu0
        %v1366 = vpop.f32.mrf.mxu0
        %v1367 = vadd.f32 %v1270, %v1366
        %v1368 = vpop.f32.mrf.mxu0
        %1369 = vdwg.mxu0
        %1370 = vmatprep.subr.bf16.mxu0 0
        %1371 = vmatpush1.bf16.msra.mxu0 0
        %1372 = vmatprep.subr.bf16.mxu0 0
        %1373 = vmatpush1.bf16.msra.mxu0 0
        %1374 = vmatprep.subr.bf16.mxu0 0
        %1375 = vmatpush1.bf16.msra.mxu0 0
        %1376 = vmatprep.subr.bf16.mxu0 0
        %1377 = vmatpush1.bf16.msra.mxu0 0
        %1378 = vmatprep.subr.bf16.mxu0 0
        %1379 = vmatpush1.bf16.msra.mxu0 %v1077
        %1380 = vmatprep.subr.bf16.mxu0 0
        %1381 = vmatpush1.bf16.msra.mxu0 %v994
        %1382 = vmatprep.subr.bf16.mxu0 0
        %1383 = vmatpush1.bf16.msra.mxu0 %v993
        %1384 = vmatprep.subr.bf16.mxu0 0
        %1385 = vmatpush1.bf16.msra.mxu0 %v992
        %1386 = vmatprep.subr.bf16.mxu0 0
        %1387 = vmatpush2.bf16.msra.mxu0 0
        %1388 = vmatprep.subr.bf16.mxu0 0
        %1389 = vmatpush2.bf16.msra.mxu0 0
        %1390 = vmatprep.subr.bf16.mxu0 0
        %1391 = vmatpush2.bf16.msra.mxu0 0
        %1392 = vmatprep.subr.bf16.mxu0 0
        %1393 = vmatpush2.bf16.msra.mxu0 0
        %1394 = vmatprep.subr.bf16.mxu0 0
        %1395 = vmatpush2.bf16.msra.mxu0 0
        %1396 = vmatprep.subr.bf16.mxu0 0
        %1397 = vmatpush2.bf16.msra.mxu0 0
        %1398 = vmatprep.subr.bf16.mxu0 0
        %1399 = vmatpush2.bf16.msra.mxu0 0
        %1400 = vmatprep.subr.bf16.mxu0 0
        %1401 = vmatpush2.bf16.msra.mxu0 0
        %1402 = vmatprep.mubr.bf16.mxu0 0
        %1403 = vmatmul.mubr.bf16.gmra.mxu0 %v1049
        %v1404 = vpop.f32.mrf.mxu0
        %v1405 = vadd.f32 %v1308, %v1404
        %v1406 = vpop.f32.mrf.mxu0
        %v1407 = vpop.f32.mrf.mxu0
        %v1408 = vadd.f32 %v1311, %v1407
        %v1409 = vpop.f32.mrf.mxu0
        %1410 = vmatprep.mubr.bf16.mxu0 0
        %1411 = vmatmul.mubr.bf16.gmra.mxu0 %v1052
        %v1412 = vpop.f32.mrf.mxu0
        %v1413 = vadd.f32 %v1316, %v1412
        %v1414 = vpop.f32.mrf.mxu0
        %v1415 = vpop.f32.mrf.mxu0
        %v1416 = vadd.f32 %v1319, %v1415
        %v1417 = vpop.f32.mrf.mxu0
        %1418 = vmatprep.mubr.bf16.mxu0 0
        %1419 = vmatmul.mubr.bf16.gmra.mxu0 %v1055
        %v1420 = vpop.f32.mrf.mxu0
        %v1421 = vadd.f32 %v1324, %v1420
        %v1422 = vpop.f32.mrf.mxu0
        %v1423 = vpop.f32.mrf.mxu0
        %v1424 = vadd.f32 %v1327, %v1423
        %v1425 = vpop.f32.mrf.mxu0
        %1426 = vmatprep.mubr.bf16.mxu0 0
        %1427 = vmatmul.mubr.bf16.gmra.mxu0 %v1058
        %v1428 = vpop.f32.mrf.mxu0
        %v1429 = vadd.f32 %v1332, %v1428
        %v1430 = vpop.f32.mrf.mxu0
        %v1431 = vpop.f32.mrf.mxu0
        %v1432 = vadd.f32 %v1335, %v1431
        %v1433 = vpop.f32.mrf.mxu0
        %1434 = vmatprep.mubr.bf16.mxu0 0
        %1435 = vmatmul.mubr.bf16.gmra.mxu0 %v1061
        %v1436 = vpop.f32.mrf.mxu0
        %v1437 = vadd.f32 %v1340, %v1436
        %v1438 = vpop.f32.mrf.mxu0
        %v1439 = vpop.f32.mrf.mxu0
        %v1440 = vadd.f32 %v1343, %v1439
        %v1441 = vpop.f32.mrf.mxu0
        %1442 = vmatprep.mubr.bf16.mxu0 0
        %1443 = vmatmul.mubr.bf16.gmra.mxu0 %v1064
        %v1444 = vpop.f32.mrf.mxu0
        %v1445 = vadd.f32 %v1348, %v1444
        %v1446 = vpop.f32.mrf.mxu0
        %v1447 = vpop.f32.mrf.mxu0
        %v1448 = vadd.f32 %v1351, %v1447
        %v1449 = vpop.f32.mrf.mxu0
        %1450 = vmatprep.mubr.bf16.mxu0 0
        %1451 = vmatmul.mubr.bf16.gmra.mxu0 %v1067
        %v1452 = vpop.f32.mrf.mxu0
        %v1453 = vadd.f32 %v1356, %v1452
        %v1454 = vpop.f32.mrf.mxu0
        %v1455 = vpop.f32.mrf.mxu0
        %v1456 = vadd.f32 %v1359, %v1455
        %v1457 = vpop.f32.mrf.mxu0
        %1458 = vmatprep.mubr.bf16.mxu0 0
        %1459 = vmatmul.mubr.bf16.gmra.mxu0 %v1070
        %v1460 = vpop.f32.mrf.mxu0
        %v1461 = vadd.f32 %v1364, %v1460
        %v1462 = vpop.f32.mrf.mxu0
        %v1463 = vpop.f32.mrf.mxu0
        %v1464 = vadd.f32 %v1367, %v1463
        %v1465 = vpop.f32.mrf.mxu0
        %1466 = vdwg.mxu0
        %v1467 = vmax.f32 %v1405, 0.0
        %v1468 = vmax.f32 %v1408, 0.0
        %v1469 = vmax.f32 %v1413, 0.0
        %v1470 = vmax.f32 %v1416, 0.0
        %v1471 = vmax.f32 %v1421, 0.0
        %v1472 = vmax.f32 %v1424, 0.0
        %v1473 = vmax.f32 %v1429, 0.0
        %v1474 = vmax.f32 %v1432, 0.0
        %v1475 = vmax.f32 %v1437, 0.0
        %v1476 = vmax.f32 %v1440, 0.0
        %v1477 = vmax.f32 %v1445, 0.0
        %v1478 = vmax.f32 %v1448, 0.0
        %v1479 = vmax.f32 %v1453, 0.0
        %v1480 = vmax.f32 %v1456, 0.0
        %v1481 = vmax.f32 %v1461, 0.0
        %v1482 = vmax.f32 %v1464, 0.0
        %v1483 = vpack.c.bf16 %v1468, %v1467
        %v1484 = vpack.c.bf16 %v1470, %v1469
        %v1485 = vpack.c.bf16 %v1472, %v1471
        %v1486 = vpack.c.bf16 %v1474, %v1473
        %v1487 = vpack.c.bf16 %v1476, %v1475
        %v1488 = vpack.c.bf16 %v1478, %v1477
        %v1489 = vpack.c.bf16 %v1480, %v1479
        %v1490 = vpack.c.bf16 %v1482, %v1481
        %v1491 = vld [vmem:[%s3] sm:$0xf]
        %v1492 = vld [vmem:[%s3 + $0x4] sm:$0xf]
        %v1493 = vld [vmem:[%s3 + $0x8] sm:$0xf]
        %v1494 = vld [vmem:[%s3 + $0xc] sm:$0xf]
        %v1495 = vld [vmem:[%s3 + $0x10] sm:$0xf]
        %v1496 = vld [vmem:[%s3 + $0x14] sm:$0xf]
        %v1497 = vld [vmem:[%s3 + $0x18] sm:$0xf]
        %v1498 = vld [vmem:[%s3 + $0x1c] sm:$0xf]
        %v1499 = vld [vmem:[%s4] sm:$0x1]
        %v1501 = vlaneseq
        %v1502 = vshrl.u32 %v1501, 7
        %v1503 = vsub.s32 0, %v1502
        %v1504 = vrot.slane %v1499, %v1503
        %v1514 = vunpack.c.l.b16 %v1491
        %v1515 = vunpack.c.l.b16 %v1492
        %v1516 = vunpack.c.l.b16 %v1493
        %v1517 = vunpack.c.l.b16 %v1494
        %v1518 = vunpack.c.l.b16 %v1495
        %v1519 = vunpack.c.l.b16 %v1496
        %v1520 = vunpack.c.l.b16 %v1497
        %v1521 = vunpack.c.l.b16 %v1498
        %v1522 = vpack.c.b16 %v1515, %v1514
        %v1523 = vpack.c.b16 %v1517, %v1516
        %v1524 = vpack.c.b16 %v1519, %v1518
        %v1525 = vpack.c.b16 %v1521, %v1520
        %vm1530 = vcmask 523264
        %v1532 = vsel %vm1530, %v1483, 0
        %v1535 = vsel %vm1530, %v1484, 0
        %v1538 = vsel %vm1530, %v1485, 0
        %v1541 = vsel %vm1530, %v1486, 0
        %v1544 = vsel %vm1530, %v1487, 0
        %v1547 = vsel %vm1530, %v1488, 0
        %v1550 = vsel %vm1530, %v1489, 0
        %v1553 = vsel %vm1530, %v1490, 0
        %1555 = vmatprep.subr.bf16.mxu0 0
        %1556 = vmatpush1.bf16.msra.mxu0 0
        %1557 = vmatprep.subr.bf16.mxu0 0
        %1558 = vmatpush1.bf16.msra.mxu0 0
        %1559 = vmatprep.subr.bf16.mxu0 0
        %1560 = vmatpush1.bf16.msra.mxu0 0
        %1561 = vmatprep.subr.bf16.mxu0 0
        %1562 = vmatpush1.bf16.msra.mxu0 0
        %1563 = vmatprep.subr.bf16.mxu0 0
        %1564 = vmatpush1.bf16.msra.mxu0 %v1525
        %1565 = vmatprep.subr.bf16.mxu0 0
        %1566 = vmatpush1.bf16.msra.mxu0 %v1524
        %1567 = vmatprep.subr.bf16.mxu0 0
        %1568 = vmatpush1.bf16.msra.mxu0 %v1523
        %1569 = vmatprep.subr.bf16.mxu0 0
        %1570 = vmatpush1.bf16.msra.mxu0 %v1522
        %1571 = vmatprep.subr.bf16.mxu0 0
        %1572 = vmatpush2.bf16.msra.mxu0 0
        %1573 = vmatprep.subr.bf16.mxu0 0
        %1574 = vmatpush2.bf16.msra.mxu0 0
        %1575 = vmatprep.subr.bf16.mxu0 0
        %1576 = vmatpush2.bf16.msra.mxu0 0
        %1577 = vmatprep.subr.bf16.mxu0 0
        %1578 = vmatpush2.bf16.msra.mxu0 0
        %1579 = vmatprep.subr.bf16.mxu0 0
        %1580 = vmatpush2.bf16.msra.mxu0 0
        %1581 = vmatprep.subr.bf16.mxu0 0
        %1582 = vmatpush2.bf16.msra.mxu0 0
        %1583 = vmatprep.subr.bf16.mxu0 0
        %1584 = vmatpush2.bf16.msra.mxu0 0
        %1585 = vmatprep.subr.bf16.mxu0 0
        %1586 = vmatpush2.bf16.msra.mxu0 0
        %1587 = vmatprep.mubr.bf16.mxu0 0
        %1588 = vmatmul.mubr.bf16.gmra.mxu0 %v1532
        %v1589 = vpop.f32.mrf.mxu0
        %v1590 = vadd.f32 %v1504, %v1589
        %v1591 = vpop.f32.mrf.mxu0
        %v1592 = vpop.f32.mrf.mxu0
        %v1593 = vadd.f32 %v1504, %v1592
        %v1594 = vpop.f32.mrf.mxu0
        %1595 = vmatprep.mubr.bf16.mxu0 0
        %1596 = vmatmul.mubr.bf16.gmra.mxu0 %v1535
        %v1597 = vpop.f32.mrf.mxu0
        %v1598 = vadd.f32 %v1504, %v1597
        %v1599 = vpop.f32.mrf.mxu0
        %v1600 = vpop.f32.mrf.mxu0
        %v1601 = vadd.f32 %v1504, %v1600
        %v1602 = vpop.f32.mrf.mxu0
        %1603 = vmatprep.mubr.bf16.mxu0 0
        %1604 = vmatmul.mubr.bf16.gmra.mxu0 %v1538
        %v1605 = vpop.f32.mrf.mxu0
        %v1606 = vadd.f32 %v1504, %v1605
        %v1607 = vpop.f32.mrf.mxu0
        %v1608 = vpop.f32.mrf.mxu0
        %v1609 = vadd.f32 %v1504, %v1608
        %v1610 = vpop.f32.mrf.mxu0
        %1611 = vmatprep.mubr.bf16.mxu0 0
        %1612 = vmatmul.mubr.bf16.gmra.mxu0 %v1541
        %v1613 = vpop.f32.mrf.mxu0
        %v1614 = vadd.f32 %v1504, %v1613
        %v1615 = vpop.f32.mrf.mxu0
        %v1616 = vpop.f32.mrf.mxu0
        %v1617 = vadd.f32 %v1504, %v1616
        %v1618 = vpop.f32.mrf.mxu0
        %1619 = vmatprep.mubr.bf16.mxu0 0
        %1620 = vmatmul.mubr.bf16.gmra.mxu0 %v1544
        %v1621 = vpop.f32.mrf.mxu0
        %v1622 = vadd.f32 %v1504, %v1621
        %v1623 = vpop.f32.mrf.mxu0
        %v1624 = vpop.f32.mrf.mxu0
        %v1625 = vadd.f32 %v1504, %v1624
        %v1626 = vpop.f32.mrf.mxu0
        %1627 = vmatprep.mubr.bf16.mxu0 0
        %1628 = vmatmul.mubr.bf16.gmra.mxu0 %v1547
        %v1629 = vpop.f32.mrf.mxu0
        %v1630 = vadd.f32 %v1504, %v1629
        %v1631 = vpop.f32.mrf.mxu0
        %v1632 = vpop.f32.mrf.mxu0
        %v1633 = vadd.f32 %v1504, %v1632
        %v1634 = vpop.f32.mrf.mxu0
        %1635 = vmatprep.mubr.bf16.mxu0 0
        %1636 = vmatmul.mubr.bf16.gmra.mxu0 %v1550
        %v1637 = vpop.f32.mrf.mxu0
        %v1638 = vadd.f32 %v1504, %v1637
        %v1639 = vpop.f32.mrf.mxu0
        %v1640 = vpop.f32.mrf.mxu0
        %v1641 = vadd.f32 %v1504, %v1640
        %v1642 = vpop.f32.mrf.mxu0
        %1643 = vmatprep.mubr.bf16.mxu0 0
        %1644 = vmatmul.mubr.bf16.gmra.mxu0 %v1553
        %v1645 = vpop.f32.mrf.mxu0
        %v1646 = vadd.f32 %v1504, %v1645
        %v1647 = vpop.f32.mrf.mxu0
        %v1648 = vpop.f32.mrf.mxu0
        %v1649 = vadd.f32 %v1504, %v1648
        %v1650 = vpop.f32.mrf.mxu0
        %1651 = vdwg.mxu0
        %v1652 = vmax.f32 %v1590, 0.0
        %v1653 = vmax.f32 %v1593, 0.0
        %v1654 = vmax.f32 %v1598, 0.0
        %v1655 = vmax.f32 %v1601, 0.0
        %v1656 = vmax.f32 %v1606, 0.0
        %v1657 = vmax.f32 %v1609, 0.0
        %v1658 = vmax.f32 %v1614, 0.0
        %v1659 = vmax.f32 %v1617, 0.0
        %v1660 = vmax.f32 %v1622, 0.0
        %v1661 = vmax.f32 %v1625, 0.0
        %v1662 = vmax.f32 %v1630, 0.0
        %v1663 = vmax.f32 %v1633, 0.0
        %v1664 = vmax.f32 %v1638, 0.0
        %v1665 = vmax.f32 %v1641, 0.0
        %v1666 = vmax.f32 %v1646, 0.0
        %v1667 = vmax.f32 %v1649, 0.0
        %v1668 = vpack.c.bf16 %v1653, %v1652
        %v1669 = vpack.c.bf16 %v1655, %v1654
        %v1670 = vpack.c.bf16 %v1657, %v1656
        %v1671 = vpack.c.bf16 %v1659, %v1658
        %v1672 = vpack.c.bf16 %v1661, %v1660
        %v1673 = vpack.c.bf16 %v1663, %v1662
        %v1674 = vpack.c.bf16 %v1665, %v1664
        %v1675 = vpack.c.bf16 %v1667, %v1666
        %v1676 = vld [vmem:[%s5] sm:$0x1]
        %v1677 = vld [vmem:[#allocation2] sm:$0x1]
        %1679 = vset.pattern.permute.xlu0 0
        %1680 = vperm.xlu0 %1679, %v1677
        %v1681 = vpop.permute.xlu0 %1680
        %v1683 = vlaneseq
        %v1684 = vshrl.u32 %v1683, 7
        %v1685 = vsub.s32 0, %v1684
        %v1686 = vrot.slane %v1681, %v1685
        %1687 = vmatprep.subr.bf16.mxu0 0
        %1688 = vmatpush1.bf16.xpose.msra.mxu0 %v1675
        %1689 = vmatprep.subr.bf16.mxu0 0
        %1690 = vmatpush1.bf16.xpose.msra.mxu0 %v1674
        %1691 = vmatprep.subr.bf16.mxu0 0
        %1692 = vmatpush1.bf16.xpose.msra.mxu0 %v1673
        %1693 = vmatprep.subr.bf16.mxu0 0
        %1694 = vmatpush1.bf16.xpose.msra.mxu0 %v1672
        %1695 = vmatprep.subr.bf16.mxu0 0
        %1696 = vmatpush1.bf16.xpose.msra.mxu0 %v1671
        %1697 = vmatprep.subr.bf16.mxu0 0
        %1698 = vmatpush1.bf16.xpose.msra.mxu0 %v1670
        %1699 = vmatprep.subr.bf16.mxu0 0
        %1700 = vmatpush1.bf16.xpose.msra.mxu0 %v1669
        %1701 = vmatprep.subr.bf16.mxu0 0
        %1702 = vmatpush1.bf16.xpose.msra.mxu0 %v1668
        %1703 = vmatprep.subr.bf16.mxu0 0
        %1704 = vmatpush2.bf16.xpose.msra.mxu0 0
        %1705 = vmatprep.subr.bf16.mxu0 0
        %1706 = vmatpush2.bf16.xpose.msra.mxu0 0
        %1707 = vmatprep.subr.bf16.mxu0 0
        %1708 = vmatpush2.bf16.xpose.msra.mxu0 0
        %1709 = vmatprep.subr.bf16.mxu0 0
        %1710 = vmatpush2.bf16.xpose.msra.mxu0 0
        %1711 = vmatprep.subr.bf16.mxu0 0
        %1712 = vmatpush2.bf16.xpose.msra.mxu0 0
        %1713 = vmatprep.subr.bf16.mxu0 0
        %1714 = vmatpush2.bf16.xpose.msra.mxu0 0
        %1715 = vmatprep.subr.bf16.mxu0 0
        %1716 = vmatpush2.bf16.xpose.msra.mxu0 0
        %1717 = vmatprep.subr.bf16.mxu0 0
        %1718 = vmatpush2.bf16.xpose.msra.mxu0 0
        %1719 = vmatprep.mubr.bf16.mxu0 0
        %1720 = vmatmul.mubr.bf16.gmra.mxu0 %v1676
        %v1721 = vpop.f32.mrf.mxu0
        %v1722 = vadd.f32 %v1686, %v1721
        %v1723 = vpop.f32.mrf.mxu0
        %v1724 = vpop.f32.mrf.mxu0
        %v1725 = vpop.f32.mrf.mxu0
        %1726 = vdwg.mxu0
        %v1727 = vxor.u32 %v1722, 2147483648
        %v1728 = vmul.f32 %v1727, 1.442695
        %v1729 = vpow.pop %v1728
        %v1730 = vadd.f32 %v1729, 1.0
        %v1731 = vrcp.pop %v1730
        %v1732 = vmul.f32 1.0, %v1731
        %1733 = vst [vmem:[%s275] sm:$0x1] %v1732
        %s1734 = sand.u32 %s183, 1
        %s1735 = scalar_lea.sflag [#allocation4], %s1734
        %s1736 = sand.u32 %s183, 1
        %s1737 = scalar_lea.vmem [#allocation3], %s1736
        // Predicated region
        $region49: #{tpu_custom_call.1} parent=47 // pred_check
          %p1738 = pneg %p193
        $region50: #{tpu_custom_call.1} parent=47 // pred_check_branch
          %1740 = sbr.rel (%p1738) target = $region52
        $region51: #{tpu_custom_call.1} parent=47 // pred_region
          %s1742 = ssub.s32 16, 16
          %1743 = vsyncadd %s1735, %s1742
          %s1744 = smul.addr %s23, 16
          %s1745 = scalar_lea.hbm %s7, %s1744
          %s1747 = sshll.u32 %s1737, 4
          %s1748 = int_to_ptr.vmem [resolvable:$true] %s1747
          %1750 = dma.vmem_to_hbm [thread:$0]  %s1748, 16, %s1745, %s1735
        $region52: #{tpu_custom_call.1} parent=47 // pred_fallthru
          _
      $region48: #{tpu_custom_call.1} parent=5 // pred_fallthru
        _
      %p1751 = scmp.le.s32.totalorder 2, %s18
      // Predicated region
      $region53: #{tpu_custom_call.1} parent=5 // pred_check
        %p1752 = pneg %p1751
      $region54: #{tpu_custom_call.1} parent=5 // pred_check_branch
        %1754 = sbr.rel (%p1752) target = $region56
      $region55: #{tpu_custom_call.1} parent=5 // pred_region
        %s1755 = ssub.s32 %s18, 2
        // Predicated region
        $region57: #{tpu_custom_call.1} parent=55 // pred_check
          %p1756 = pneg %p199
        $region58: #{tpu_custom_call.1} parent=55 // pred_check_branch
          %1758 = sbr.rel (%p1756) target = $region60
        $region59: #{tpu_custom_call.1} parent=55 // pred_region
          %s1759 = sand.u32 %s184, 1
          %s1760 = scalar_lea.sflag [#allocation4], %s1759
          %s1761 = sand.u32 %s184, 1
          %s1762 = scalar_lea.vmem [#allocation3], %s1761
          %1763 = dma.done %s1760, 16
        $region60: #{tpu_custom_call.1} parent=55 // pred_fallthru
          _
      $region56: #{tpu_custom_call.1} parent=5 // pred_fallthru
        _
    $region6: #{tpu_custom_call.1} parent=1 // loop_footer
      %s22 = sadd.s32 1, %s18
    $region7: #{tpu_custom_call.1} parent=1 // loop_footer_branch
      %17 = sbr.rel target = $region3
    $region8: #{tpu_custom_call.1} parent=1 // loop_exit
      _
    %1764 = vsyncpa [#allocation4], 1
    %s1765 = scalar_lea.sflag [#allocation4], 1
    %1766 = vsyncpa %s1765, 1

</llo_original>
